<compile_context>
chip_gen: v5e
topology: v5e:2x2
jax: 0.10.0
libtpu: 0.0.40
codegen_flags: <defaults>
</compile_context>

<pallas_src>
import functools

import jax
import jax.numpy as jnp
from jax.experimental import pallas as pl
from jax.experimental.pallas import tpu as pltpu


def _attention_kernel(x_ref, wqv_ref, wkT_ref, wo_ref, bo_ref, o_ref, *,
                      batch, seq, heads, dim_head, compute_dtype, approx_recip):
    inner = heads * dim_head

    # Load once; cast to the MXU compute dtype inside the kernel (cheap VPU
    # pass over B*N*D elements) instead of a separate wrapper-side XLA op.
    x_f32 = x_ref[...]                                   # (B*N, D), input dtype
    xc = x_f32.astype(compute_dtype)

    # One fused [Q | V] projection over all B*N rows (M=16, not 2 x M=8).
    # The softmax scale is already folded into the Q columns of w_qv.
    qv = jnp.dot(xc, wqv_ref[...],
                 preferred_element_type=jnp.float32)     # (B*N, 2*inner), f32

    wkT = wkT_ref[...]                                   # (inner, D)

    ctx_rows = []
    for b in range(batch):
        r0 = b * seq
        # f32 row slices are sublane-aligned (seq == 8); cast each batch block
        # once, then the per-head column slices (128-aligned lanes) are free.
        qv_b = qv[r0:r0 + seq, :].astype(compute_dtype)  # (N, 2*inner)

        # K directly in transposed layout: kT_b = w_k^T @ x_b^T.  One tiny
        # (N, D) transpose per batch instead of a per-head trans-B contraction
        # (removes heads*B XLU transposes from the scores matmuls).
        xbT = x_f32[r0:r0 + seq, :].T.astype(compute_dtype)          # (D, N)
        kT_b = jnp.dot(wkT, xbT, preferred_element_type=jnp.float32
                       ).astype(compute_dtype)                       # (inner, N)

        parts = []
        for h in range(heads):
            lo = h * dim_head
            hi = lo + dim_head
            q_h = qv_b[:, lo:hi]                          # (N, dh), pre-scaled
            v_h = qv_b[:, inner + lo:inner + hi]          # (N, dh)
            kT_h = kT_b[lo:hi, :]                         # (dh, N)

            # Plain contraction on the MXU, f32 scores.
            dots = jnp.dot(q_h, kT_h,
                           preferred_element_type=jnp.float32)       # (N, N)

            # Numerically stable softmax; all elementwise math in f32.
            dots = dots - jnp.max(dots, axis=-1, keepdims=True)
            p = jnp.exp(dots)
            denom = jnp.sum(p, axis=-1, keepdims=True)
            attn = p * pl.reciprocal(denom, approx=approx_recip)

            parts.append(jnp.dot(attn.astype(compute_dtype), v_h,
                                 preferred_element_type=jnp.float32))  # (N, dh)

        ctx_rows.append(jnp.concatenate(parts, axis=-1))               # (N, inner)

    # Lane-concatenated context -> ONE wide output projection + bias.
    ctx = jnp.concatenate(ctx_rows, axis=0).astype(compute_dtype)      # (B*N, inner)
    out = jnp.dot(ctx, wo_ref[...],
                  preferred_element_type=jnp.float32)                  # (B*N, D)
    out = out + bo_ref[...]                                            # (1, D) bcast
    o_ref[...] = out.astype(o_ref.dtype)


def prepare_attention_weights(w_qkv, w_out, b_out, *, heads, dim_head,
                              precise=False):
    """Init-time weight prep: cast / reshape / transpose / scale-fold ONCE."""
    dim = w_qkv.shape[0]
    inner = heads * dim_head
    assert w_qkv.shape == (dim, 3 * inner)
    assert w_out.shape == (inner, dim)
    assert b_out.shape == (dim,)

    compute_dtype = jnp.float32 if precise else jnp.bfloat16
    scale = float(dim_head) ** (-0.5)

    w_q = w_qkv[:, :inner] * scale                 # fold softmax scale into Q
    w_v = w_qkv[:, 2 * inner:]
    w_qv = jnp.concatenate([w_q, w_v], axis=1).astype(compute_dtype)  # (D, 2*inner)
    w_kT = w_qkv[:, inner:2 * inner].T.astype(compute_dtype)          # (inner, D)
    w_o = w_out.astype(compute_dtype)                                 # (inner, D)
    b_o = b_out.reshape(1, dim).astype(jnp.float32)                   # (1, D)
    return w_qv, w_kT, w_o, b_o, compute_dtype


def attention_pallas(x, w_qv, w_kT, w_o, b_o, *, heads, dim_head,
                     compute_dtype, approx_recip=True):
    """Fused multi-head attention forward matching the PyTorch module."""
    b, n, dim = x.shape
    inner = heads * dim_head
    bn = b * n
    assert w_qv.shape == (dim, 2 * inner)
    assert w_kT.shape == (inner, dim)
    assert w_o.shape == (inner, dim)
    assert b_o.shape == (1, dim)

    # Free metadata-only reshape: present the whole batch as one (B*N, D) slab
    # so a single grid step / one fused QV matmul covers all rows.
    x2 = x.reshape(bn, dim)

    kernel = functools.partial(
        _attention_kernel, batch=b, seq=n, heads=heads, dim_head=dim_head,
        compute_dtype=compute_dtype, approx_recip=approx_recip)

    out = pl.pallas_call(
        kernel,
        out_shape=jax.ShapeDtypeStruct((bn, dim), x.dtype),
        grid_spec=pltpu.PrefetchScalarGridSpec(
            num_scalar_prefetch=0,
            grid=(1,),  # single step: no serial-grid overhead on 1-TC chips
            in_specs=[
                pl.BlockSpec((bn, dim), lambda i: (0, 0)),           # x
                pl.BlockSpec((dim, 2 * inner), lambda i: (0, 0)),    # w_qv
                pl.BlockSpec((inner, dim), lambda i: (0, 0)),        # w_kT
                pl.BlockSpec((inner, dim), lambda i: (0, 0)),        # w_out
                pl.BlockSpec((1, dim), lambda i: (0, 0)),            # b_out
            ],
            out_specs=pl.BlockSpec((bn, dim), lambda i: (0, 0)),
        ),
        compiler_params=pltpu.CompilerParams(
            dimension_semantics=("arbitrary",)),
    )(x2, w_qv, w_kT, w_o, b_o)
    return out.reshape(b, n, dim)


def attention_reference(x, w_qkv, w_out, b_out, *, heads, dim_head):
    """Pure-JAX reference mirroring the PyTorch forward pass (f32)."""
    b, n, dim = x.shape
    inner = heads * dim_head
    scale = dim_head ** (-0.5)
    qkv = x @ w_qkv                                       # (b, n, 3*inner)
    q, k, v = jnp.split(qkv, 3, axis=-1)                  # == torch .chunk(3, -1)

    def split_heads(t):                                   # 'b n (h d) -> b h n d'
        return t.reshape(b, n, heads, dim_head).transpose(0, 2, 1, 3)

    q, k, v = map(split_heads, (q, k, v))
    dots = jnp.einsum("bhnd,bhmd->bhnm", q, k) * scale
    attn = jax.nn.softmax(dots, axis=-1)
    out = jnp.einsum("bhnm,bhmd->bhnd", attn, v)
    out = out.transpose(0, 2, 1, 3).reshape(b, n, inner)  # 'b h n d -> b n (h d)'
    return out @ w_out + b_out                            # to_out Linear (+bias)
    # Dropout(p=0.0) is the identity in eval -> nothing to model.


if __name__ == "__main__":
    # Shapes consistent with the module (heads=4, dim_head=128 =>
    # project_out=True, so to_out = Linear(512, 32) + Dropout(0)).
    B, N, DIM = 2, 8, 32
    HEADS, DIM_HEAD = 4, 128
    INNER = HEADS * DIM_HEAD

    key = jax.random.PRNGKey(0)
    kx, kqkv, ko, kb = jax.random.split(key, 4)

    x = jax.random.normal(kx, (B, N, DIM), dtype=jnp.float32)
    w_qkv = jax.random.normal(kqkv, (DIM, 3 * INNER), dtype=jnp.float32) * 0.05
    w_out = jax.random.normal(ko, (INNER, DIM), dtype=jnp.float32) * 0.05
    b_out = jax.random.normal(kb, (DIM,), dtype=jnp.float32) * 0.05

    ref = attention_reference(x, w_qkv, w_out, b_out,
                              heads=HEADS, dim_head=DIM_HEAD)

    # 1) Default fast path: bf16 MXU operands + approx reciprocal.
    w_qv_f, w_kT_f, w_o_f, b_o_f, cdt_f = prepare_attention_weights(
        w_qkv, w_out, b_out, heads=HEADS, dim_head=DIM_HEAD, precise=False)
    out_fast = attention_pallas(x, w_qv_f, w_kT_f, w_o_f, b_o_f,
                                heads=HEADS, dim_head=DIM_HEAD,
                                compute_dtype=cdt_f, approx_recip=True)
    out_fast = jax.block_until_ready(out_fast)
    assert out_fast.shape == (B, N, DIM)
    assert jnp.allclose(out_fast, ref, rtol=2e-2, atol=2e-2), (
        float(jnp.max(jnp.abs(out_fast - ref))))

    # 2) Precise path (validation-only on v5e): f32 matmuls + exact reciprocal.
    w_qv_p, w_kT_p, w_o_p, b_o_p, cdt_p = prepare_attention_weights(
        w_qkv, w_out, b_out, heads=HEADS, dim_head=DIM_HEAD, precise=True)
    out_precise = attention_pallas(x, w_qv_p, w_kT_p, w_o_p, b_o_p,
                                   heads=HEADS, dim_head=DIM_HEAD,
                                   compute_dtype=cdt_p, approx_recip=False)
    out_precise = jax.block_until_ready(out_precise)
    assert jnp.allclose(out_precise, ref, rtol=1e-4, atol=1e-4), (
        float(jnp.max(jnp.abs(out_precise - ref))))

    print("KERNEL_OK")
</pallas_src>

<mosaic_0001>
module attributes {stable_mosaic.version = 11 : i64} {
  func.func @_attention_kernel(%arg0: i32, %arg1: memref<16x32xf32, #tpu.memory_space<vmem>>, %arg2: memref<32x1024xbf16, #tpu.memory_space<vmem>>, %arg3: memref<512x32xbf16, #tpu.memory_space<vmem>>, %arg4: memref<512x32xbf16, #tpu.memory_space<vmem>>, %arg5: memref<1x32xf32, #tpu.memory_space<vmem>>, %arg6: memref<16x32xf32, #tpu.memory_space<vmem>>) attributes {dimension_semantics = [#tpu.dimension_semantics<arbitrary>], iteration_bounds = array<i64: 1>, scalar_prefetch = 0 : i64, scratch_operands = 0 : i64, tpu.core_type = #tpu.core_type<tc>, window_params = [{pipeline_mode = #tpu.pipeline_mode<synchronous>, transform_indices = @transform_0, window_bounds = array<i64: 16, 32>}, {pipeline_mode = #tpu.pipeline_mode<synchronous>, transform_indices = @transform_1, window_bounds = array<i64: 32, 1024>}, {pipeline_mode = #tpu.pipeline_mode<synchronous>, transform_indices = @transform_2, window_bounds = array<i64: 512, 32>}, {pipeline_mode = #tpu.pipeline_mode<synchronous>, transform_indices = @transform_3, window_bounds = array<i64: 512, 32>}, {pipeline_mode = #tpu.pipeline_mode<synchronous>, transform_indices = @transform_4, window_bounds = array<i64: 1, 32>}, {pipeline_mode = #tpu.pipeline_mode<synchronous>, transform_indices = @transform_5, window_bounds = array<i64: 16, 32>}]} {
    %c0 = arith.constant 0 : index
    %c0_0 = arith.constant 0 : index
    %0 = vector.load %arg1[%c0, %c0_0] : memref<16x32xf32, #tpu.memory_space<vmem>>, vector<16x32xf32>
    %1 = arith.truncf %0 : vector<16x32xf32> to vector<16x32xbf16>
    %c0_1 = arith.constant 0 : index
    %c0_2 = arith.constant 0 : index
    %2 = vector.load %arg2[%c0_1, %c0_2] : memref<32x1024xbf16, #tpu.memory_space<vmem>>, vector<32x1024xbf16>
    %cst = arith.constant dense<0.000000e+00> : vector<16x1024xf32>
    %3 = tpu.matmul %1, %2, %cst {dimension_numbers = #tpu.dot_dimension_numbers<[1], [0], [0], [1], [0, 0, 1, 1], [], []>} : vector<16x32xbf16>, vector<32x1024xbf16>, vector<16x1024xf32> -> vector<16x1024xf32>
    %c0_3 = arith.constant 0 : index
    %c0_4 = arith.constant 0 : index
    %4 = vector.load %arg3[%c0_3, %c0_4] : memref<512x32xbf16, #tpu.memory_space<vmem>>, vector<512x32xbf16>
    %5 = vector.extract_strided_slice %3 {offsets = [0, 0], sizes = [8, 1024], strides = [1, 1]} : vector<16x1024xf32> to vector<8x1024xf32>
    %6 = arith.truncf %5 : vector<8x1024xf32> to vector<8x1024xbf16>
    %7 = vector.extract_strided_slice %0 {offsets = [0, 0], sizes = [8, 32], strides = [1, 1]} : vector<16x32xf32> to vector<8x32xf32>
    %8 = tpu.transpose %7, [1, 0] : vector<8x32xf32> -> vector<32x8xf32>
    %9 = arith.truncf %8 : vector<32x8xf32> to vector<32x8xbf16>
    %cst_5 = arith.constant dense<0.000000e+00> : vector<512x8xf32>
    %10 = tpu.matmul %4, %9, %cst_5 {dimension_numbers = #tpu.dot_dimension_numbers<[1], [0], [0], [1], [0, 0, 1, 1], [], []>} : vector<512x32xbf16>, vector<32x8xbf16>, vector<512x8xf32> -> vector<512x8xf32>
    %11 = arith.truncf %10 : vector<512x8xf32> to vector<512x8xbf16>
    %12 = vector.extract_strided_slice %6 {offsets = [0, 0], sizes = [8, 128], strides = [1, 1]} : vector<8x1024xbf16> to vector<8x128xbf16>
    %13 = vector.extract_strided_slice %6 {offsets = [0, 512], sizes = [8, 128], strides = [1, 1]} : vector<8x1024xbf16> to vector<8x128xbf16>
    %14 = vector.extract_strided_slice %11 {offsets = [0, 0], sizes = [128, 8], strides = [1, 1]} : vector<512x8xbf16> to vector<128x8xbf16>
    %cst_6 = arith.constant dense<0.000000e+00> : vector<8x8xf32>
    %15 = tpu.matmul %12, %14, %cst_6 {dimension_numbers = #tpu.dot_dimension_numbers<[1], [0], [0], [1], [0, 0, 1, 1], [], []>} : vector<8x128xbf16>, vector<128x8xbf16>, vector<8x8xf32> -> vector<8x8xf32>
    %cst_7 = arith.constant dense<0xFF800000> : vector<8xf32>
    %16 = vector.multi_reduction <maximumf>, %15, %cst_7 [1] : vector<8x8xf32> to vector<8xf32>
    %17 = vector.shape_cast %16 : vector<8xf32> to vector<8x1xf32>
    %18 = vector.broadcast %17 : vector<8x1xf32> to vector<8x8xf32>
    %19 = arith.subf %15, %18 : vector<8x8xf32>
    %20 = math.exp %19 : vector<8x8xf32>
    %cst_8 = arith.constant dense<0.000000e+00> : vector<8xf32>
    %21 = vector.multi_reduction <add>, %20, %cst_8 [1] : vector<8x8xf32> to vector<8xf32>
    %22 = vector.shape_cast %21 : vector<8xf32> to vector<8x1xf32>
    %23 = tpu.reciprocal %22 {approx = true} : vector<8x1xf32> -> vector<8x1xf32>
    %24 = vector.broadcast %23 : vector<8x1xf32> to vector<8x8xf32>
    %25 = arith.mulf %20, %24 : vector<8x8xf32>
    %26 = arith.truncf %25 : vector<8x8xf32> to vector<8x8xbf16>
    %cst_9 = arith.constant dense<0.000000e+00> : vector<8x128xf32>
    %27 = tpu.matmul %26, %13, %cst_9 {dimension_numbers = #tpu.dot_dimension_numbers<[1], [0], [0], [1], [0, 0, 1, 1], [], []>} : vector<8x8xbf16>, vector<8x128xbf16>, vector<8x128xf32> -> vector<8x128xf32>
    %28 = vector.extract_strided_slice %6 {offsets = [0, 128], sizes = [8, 128], strides = [1, 1]} : vector<8x1024xbf16> to vector<8x128xbf16>
    %29 = vector.extract_strided_slice %6 {offsets = [0, 640], sizes = [8, 128], strides = [1, 1]} : vector<8x1024xbf16> to vector<8x128xbf16>
    %30 = vector.extract_strided_slice %11 {offsets = [128, 0], sizes = [128, 8], strides = [1, 1]} : vector<512x8xbf16> to vector<128x8xbf16>
    %cst_10 = arith.constant dense<0.000000e+00> : vector<8x8xf32>
    %31 = tpu.matmul %28, %30, %cst_10 {dimension_numbers = #tpu.dot_dimension_numbers<[1], [0], [0], [1], [0, 0, 1, 1], [], []>} : vector<8x128xbf16>, vector<128x8xbf16>, vector<8x8xf32> -> vector<8x8xf32>
    %cst_11 = arith.constant dense<0xFF800000> : vector<8xf32>
    %32 = vector.multi_reduction <maximumf>, %31, %cst_11 [1] : vector<8x8xf32> to vector<8xf32>
    %33 = vector.shape_cast %32 : vector<8xf32> to vector<8x1xf32>
    %34 = vector.broadcast %33 : vector<8x1xf32> to vector<8x8xf32>
    %35 = arith.subf %31, %34 : vector<8x8xf32>
    %36 = math.exp %35 : vector<8x8xf32>
    %cst_12 = arith.constant dense<0.000000e+00> : vector<8xf32>
    %37 = vector.multi_reduction <add>, %36, %cst_12 [1] : vector<8x8xf32> to vector<8xf32>
    %38 = vector.shape_cast %37 : vector<8xf32> to vector<8x1xf32>
    %39 = tpu.reciprocal %38 {approx = true} : vector<8x1xf32> -> vector<8x1xf32>
    %40 = vector.broadcast %39 : vector<8x1xf32> to vector<8x8xf32>
    %41 = arith.mulf %36, %40 : vector<8x8xf32>
    %42 = arith.truncf %41 : vector<8x8xf32> to vector<8x8xbf16>
    %cst_13 = arith.constant dense<0.000000e+00> : vector<8x128xf32>
    %43 = tpu.matmul %42, %29, %cst_13 {dimension_numbers = #tpu.dot_dimension_numbers<[1], [0], [0], [1], [0, 0, 1, 1], [], []>} : vector<8x8xbf16>, vector<8x128xbf16>, vector<8x128xf32> -> vector<8x128xf32>
    %44 = vector.extract_strided_slice %6 {offsets = [0, 256], sizes = [8, 128], strides = [1, 1]} : vector<8x1024xbf16> to vector<8x128xbf16>
    %45 = vector.extract_strided_slice %6 {offsets = [0, 768], sizes = [8, 128], strides = [1, 1]} : vector<8x1024xbf16> to vector<8x128xbf16>
    %46 = vector.extract_strided_slice %11 {offsets = [256, 0], sizes = [128, 8], strides = [1, 1]} : vector<512x8xbf16> to vector<128x8xbf16>
    %cst_14 = arith.constant dense<0.000000e+00> : vector<8x8xf32>
    %47 = tpu.matmul %44, %46, %cst_14 {dimension_numbers = #tpu.dot_dimension_numbers<[1], [0], [0], [1], [0, 0, 1, 1], [], []>} : vector<8x128xbf16>, vector<128x8xbf16>, vector<8x8xf32> -> vector<8x8xf32>
    %cst_15 = arith.constant dense<0xFF800000> : vector<8xf32>
    %48 = vector.multi_reduction <maximumf>, %47, %cst_15 [1] : vector<8x8xf32> to vector<8xf32>
    %49 = vector.shape_cast %48 : vector<8xf32> to vector<8x1xf32>
    %50 = vector.broadcast %49 : vector<8x1xf32> to vector<8x8xf32>
    %51 = arith.subf %47, %50 : vector<8x8xf32>
    %52 = math.exp %51 : vector<8x8xf32>
    %cst_16 = arith.constant dense<0.000000e+00> : vector<8xf32>
    %53 = vector.multi_reduction <add>, %52, %cst_16 [1] : vector<8x8xf32> to vector<8xf32>
    %54 = vector.shape_cast %53 : vector<8xf32> to vector<8x1xf32>
    %55 = tpu.reciprocal %54 {approx = true} : vector<8x1xf32> -> vector<8x1xf32>
    %56 = vector.broadcast %55 : vector<8x1xf32> to vector<8x8xf32>
    %57 = arith.mulf %52, %56 : vector<8x8xf32>
    %58 = arith.truncf %57 : vector<8x8xf32> to vector<8x8xbf16>
    %cst_17 = arith.constant dense<0.000000e+00> : vector<8x128xf32>
    %59 = tpu.matmul %58, %45, %cst_17 {dimension_numbers = #tpu.dot_dimension_numbers<[1], [0], [0], [1], [0, 0, 1, 1], [], []>} : vector<8x8xbf16>, vector<8x128xbf16>, vector<8x128xf32> -> vector<8x128xf32>
    %60 = vector.extract_strided_slice %6 {offsets = [0, 384], sizes = [8, 128], strides = [1, 1]} : vector<8x1024xbf16> to vector<8x128xbf16>
    %61 = vector.extract_strided_slice %6 {offsets = [0, 896], sizes = [8, 128], strides = [1, 1]} : vector<8x1024xbf16> to vector<8x128xbf16>
    %62 = vector.extract_strided_slice %11 {offsets = [384, 0], sizes = [128, 8], strides = [1, 1]} : vector<512x8xbf16> to vector<128x8xbf16>
    %cst_18 = arith.constant dense<0.000000e+00> : vector<8x8xf32>
    %63 = tpu.matmul %60, %62, %cst_18 {dimension_numbers = #tpu.dot_dimension_numbers<[1], [0], [0], [1], [0, 0, 1, 1], [], []>} : vector<8x128xbf16>, vector<128x8xbf16>, vector<8x8xf32> -> vector<8x8xf32>
    %cst_19 = arith.constant dense<0xFF800000> : vector<8xf32>
    %64 = vector.multi_reduction <maximumf>, %63, %cst_19 [1] : vector<8x8xf32> to vector<8xf32>
    %65 = vector.shape_cast %64 : vector<8xf32> to vector<8x1xf32>
    %66 = vector.broadcast %65 : vector<8x1xf32> to vector<8x8xf32>
    %67 = arith.subf %63, %66 : vector<8x8xf32>
    %68 = math.exp %67 : vector<8x8xf32>
    %cst_20 = arith.constant dense<0.000000e+00> : vector<8xf32>
    %69 = vector.multi_reduction <add>, %68, %cst_20 [1] : vector<8x8xf32> to vector<8xf32>
    %70 = vector.shape_cast %69 : vector<8xf32> to vector<8x1xf32>
    %71 = tpu.reciprocal %70 {approx = true} : vector<8x1xf32> -> vector<8x1xf32>
    %72 = vector.broadcast %71 : vector<8x1xf32> to vector<8x8xf32>
    %73 = arith.mulf %68, %72 : vector<8x8xf32>
    %74 = arith.truncf %73 : vector<8x8xf32> to vector<8x8xbf16>
    %cst_21 = arith.constant dense<0.000000e+00> : vector<8x128xf32>
    %75 = tpu.matmul %74, %61, %cst_21 {dimension_numbers = #tpu.dot_dimension_numbers<[1], [0], [0], [1], [0, 0, 1, 1], [], []>} : vector<8x8xbf16>, vector<8x128xbf16>, vector<8x128xf32> -> vector<8x128xf32>
    %76 = tpu.concatenate %27, %43, %59, %75 in 1 : vector<8x128xf32>, vector<8x128xf32>, vector<8x128xf32>, vector<8x128xf32> -> vector<8x512xf32>
    %77 = vector.extract_strided_slice %3 {offsets = [8, 0], sizes = [8, 1024], strides = [1, 1]} : vector<16x1024xf32> to vector<8x1024xf32>
    %78 = arith.truncf %77 : vector<8x1024xf32> to vector<8x1024xbf16>
    %79 = vector.extract_strided_slice %0 {offsets = [8, 0], sizes = [8, 32], strides = [1, 1]} : vector<16x32xf32> to vector<8x32xf32>
    %80 = tpu.transpose %79, [1, 0] : vector<8x32xf32> -> vector<32x8xf32>
    %81 = arith.truncf %80 : vector<32x8xf32> to vector<32x8xbf16>
    %cst_22 = arith.constant dense<0.000000e+00> : vector<512x8xf32>
    %82 = tpu.matmul %4, %81, %cst_22 {dimension_numbers = #tpu.dot_dimension_numbers<[1], [0], [0], [1], [0, 0, 1, 1], [], []>} : vector<512x32xbf16>, vector<32x8xbf16>, vector<512x8xf32> -> vector<512x8xf32>
    %83 = arith.truncf %82 : vector<512x8xf32> to vector<512x8xbf16>
    %84 = vector.extract_strided_slice %78 {offsets = [0, 0], sizes = [8, 128], strides = [1, 1]} : vector<8x1024xbf16> to vector<8x128xbf16>
    %85 = vector.extract_strided_slice %78 {offsets = [0, 512], sizes = [8, 128], strides = [1, 1]} : vector<8x1024xbf16> to vector<8x128xbf16>
    %86 = vector.extract_strided_slice %83 {offsets = [0, 0], sizes = [128, 8], strides = [1, 1]} : vector<512x8xbf16> to vector<128x8xbf16>
    %cst_23 = arith.constant dense<0.000000e+00> : vector<8x8xf32>
    %87 = tpu.matmul %84, %86, %cst_23 {dimension_numbers = #tpu.dot_dimension_numbers<[1], [0], [0], [1], [0, 0, 1, 1], [], []>} : vector<8x128xbf16>, vector<128x8xbf16>, vector<8x8xf32> -> vector<8x8xf32>
    %cst_24 = arith.constant dense<0xFF800000> : vector<8xf32>
    %88 = vector.multi_reduction <maximumf>, %87, %cst_24 [1] : vector<8x8xf32> to vector<8xf32>
    %89 = vector.shape_cast %88 : vector<8xf32> to vector<8x1xf32>
    %90 = vector.broadcast %89 : vector<8x1xf32> to vector<8x8xf32>
    %91 = arith.subf %87, %90 : vector<8x8xf32>
    %92 = math.exp %91 : vector<8x8xf32>
    %cst_25 = arith.constant dense<0.000000e+00> : vector<8xf32>
    %93 = vector.multi_reduction <add>, %92, %cst_25 [1] : vector<8x8xf32> to vector<8xf32>
    %94 = vector.shape_cast %93 : vector<8xf32> to vector<8x1xf32>
    %95 = tpu.reciprocal %94 {approx = true} : vector<8x1xf32> -> vector<8x1xf32>
    %96 = vector.broadcast %95 : vector<8x1xf32> to vector<8x8xf32>
    %97 = arith.mulf %92, %96 : vector<8x8xf32>
    %98 = arith.truncf %97 : vector<8x8xf32> to vector<8x8xbf16>
    %cst_26 = arith.constant dense<0.000000e+00> : vector<8x128xf32>
    %99 = tpu.matmul %98, %85, %cst_26 {dimension_numbers = #tpu.dot_dimension_numbers<[1], [0], [0], [1], [0, 0, 1, 1], [], []>} : vector<8x8xbf16>, vector<8x128xbf16>, vector<8x128xf32> -> vector<8x128xf32>
    %100 = vector.extract_strided_slice %78 {offsets = [0, 128], sizes = [8, 128], strides = [1, 1]} : vector<8x1024xbf16> to vector<8x128xbf16>
    %101 = vector.extract_strided_slice %78 {offsets = [0, 640], sizes = [8, 128], strides = [1, 1]} : vector<8x1024xbf16> to vector<8x128xbf16>
    %102 = vector.extract_strided_slice %83 {offsets = [128, 0], sizes = [128, 8], strides = [1, 1]} : vector<512x8xbf16> to vector<128x8xbf16>
    %cst_27 = arith.constant dense<0.000000e+00> : vector<8x8xf32>
    %103 = tpu.matmul %100, %102, %cst_27 {dimension_numbers = #tpu.dot_dimension_numbers<[1], [0], [0], [1], [0, 0, 1, 1], [], []>} : vector<8x128xbf16>, vector<128x8xbf16>, vector<8x8xf32> -> vector<8x8xf32>
    %cst_28 = arith.constant dense<0xFF800000> : vector<8xf32>
    %104 = vector.multi_reduction <maximumf>, %103, %cst_28 [1] : vector<8x8xf32> to vector<8xf32>
    %105 = vector.shape_cast %104 : vector<8xf32> to vector<8x1xf32>
    %106 = vector.broadcast %105 : vector<8x1xf32> to vector<8x8xf32>
    %107 = arith.subf %103, %106 : vector<8x8xf32>
    %108 = math.exp %107 : vector<8x8xf32>
    %cst_29 = arith.constant dense<0.000000e+00> : vector<8xf32>
    %109 = vector.multi_reduction <add>, %108, %cst_29 [1] : vector<8x8xf32> to vector<8xf32>
    %110 = vector.shape_cast %109 : vector<8xf32> to vector<8x1xf32>
    %111 = tpu.reciprocal %110 {approx = true} : vector<8x1xf32> -> vector<8x1xf32>
    %112 = vector.broadcast %111 : vector<8x1xf32> to vector<8x8xf32>
    %113 = arith.mulf %108, %112 : vector<8x8xf32>
    %114 = arith.truncf %113 : vector<8x8xf32> to vector<8x8xbf16>
    %cst_30 = arith.constant dense<0.000000e+00> : vector<8x128xf32>
    %115 = tpu.matmul %114, %101, %cst_30 {dimension_numbers = #tpu.dot_dimension_numbers<[1], [0], [0], [1], [0, 0, 1, 1], [], []>} : vector<8x8xbf16>, vector<8x128xbf16>, vector<8x128xf32> -> vector<8x128xf32>
    %116 = vector.extract_strided_slice %78 {offsets = [0, 256], sizes = [8, 128], strides = [1, 1]} : vector<8x1024xbf16> to vector<8x128xbf16>
    %117 = vector.extract_strided_slice %78 {offsets = [0, 768], sizes = [8, 128], strides = [1, 1]} : vector<8x1024xbf16> to vector<8x128xbf16>
    %118 = vector.extract_strided_slice %83 {offsets = [256, 0], sizes = [128, 8], strides = [1, 1]} : vector<512x8xbf16> to vector<128x8xbf16>
    %cst_31 = arith.constant dense<0.000000e+00> : vector<8x8xf32>
    %119 = tpu.matmul %116, %118, %cst_31 {dimension_numbers = #tpu.dot_dimension_numbers<[1], [0], [0], [1], [0, 0, 1, 1], [], []>} : vector<8x128xbf16>, vector<128x8xbf16>, vector<8x8xf32> -> vector<8x8xf32>
    %cst_32 = arith.constant dense<0xFF800000> : vector<8xf32>
    %120 = vector.multi_reduction <maximumf>, %119, %cst_32 [1] : vector<8x8xf32> to vector<8xf32>
    %121 = vector.shape_cast %120 : vector<8xf32> to vector<8x1xf32>
    %122 = vector.broadcast %121 : vector<8x1xf32> to vector<8x8xf32>
    %123 = arith.subf %119, %122 : vector<8x8xf32>
    %124 = math.exp %123 : vector<8x8xf32>
    %cst_33 = arith.constant dense<0.000000e+00> : vector<8xf32>
    %125 = vector.multi_reduction <add>, %124, %cst_33 [1] : vector<8x8xf32> to vector<8xf32>
    %126 = vector.shape_cast %125 : vector<8xf32> to vector<8x1xf32>
    %127 = tpu.reciprocal %126 {approx = true} : vector<8x1xf32> -> vector<8x1xf32>
    %128 = vector.broadcast %127 : vector<8x1xf32> to vector<8x8xf32>
    %129 = arith.mulf %124, %128 : vector<8x8xf32>
    %130 = arith.truncf %129 : vector<8x8xf32> to vector<8x8xbf16>
    %cst_34 = arith.constant dense<0.000000e+00> : vector<8x128xf32>
    %131 = tpu.matmul %130, %117, %cst_34 {dimension_numbers = #tpu.dot_dimension_numbers<[1], [0], [0], [1], [0, 0, 1, 1], [], []>} : vector<8x8xbf16>, vector<8x128xbf16>, vector<8x128xf32> -> vector<8x128xf32>
    %132 = vector.extract_strided_slice %78 {offsets = [0, 384], sizes = [8, 128], strides = [1, 1]} : vector<8x1024xbf16> to vector<8x128xbf16>
    %133 = vector.extract_strided_slice %78 {offsets = [0, 896], sizes = [8, 128], strides = [1, 1]} : vector<8x1024xbf16> to vector<8x128xbf16>
    %134 = vector.extract_strided_slice %83 {offsets = [384, 0], sizes = [128, 8], strides = [1, 1]} : vector<512x8xbf16> to vector<128x8xbf16>
    %cst_35 = arith.constant dense<0.000000e+00> : vector<8x8xf32>
    %135 = tpu.matmul %132, %134, %cst_35 {dimension_numbers = #tpu.dot_dimension_numbers<[1], [0], [0], [1], [0, 0, 1, 1], [], []>} : vector<8x128xbf16>, vector<128x8xbf16>, vector<8x8xf32> -> vector<8x8xf32>
    %cst_36 = arith.constant dense<0xFF800000> : vector<8xf32>
    %136 = vector.multi_reduction <maximumf>, %135, %cst_36 [1] : vector<8x8xf32> to vector<8xf32>
    %137 = vector.shape_cast %136 : vector<8xf32> to vector<8x1xf32>
    %138 = vector.broadcast %137 : vector<8x1xf32> to vector<8x8xf32>
    %139 = arith.subf %135, %138 : vector<8x8xf32>
    %140 = math.exp %139 : vector<8x8xf32>
    %cst_37 = arith.constant dense<0.000000e+00> : vector<8xf32>
    %141 = vector.multi_reduction <add>, %140, %cst_37 [1] : vector<8x8xf32> to vector<8xf32>
    %142 = vector.shape_cast %141 : vector<8xf32> to vector<8x1xf32>
    %143 = tpu.reciprocal %142 {approx = true} : vector<8x1xf32> -> vector<8x1xf32>
    %144 = vector.broadcast %143 : vector<8x1xf32> to vector<8x8xf32>
    %145 = arith.mulf %140, %144 : vector<8x8xf32>
    %146 = arith.truncf %145 : vector<8x8xf32> to vector<8x8xbf16>
    %cst_38 = arith.constant dense<0.000000e+00> : vector<8x128xf32>
    %147 = tpu.matmul %146, %133, %cst_38 {dimension_numbers = #tpu.dot_dimension_numbers<[1], [0], [0], [1], [0, 0, 1, 1], [], []>} : vector<8x8xbf16>, vector<8x128xbf16>, vector<8x128xf32> -> vector<8x128xf32>
    %148 = tpu.concatenate %99, %115, %131, %147 in 1 : vector<8x128xf32>, vector<8x128xf32>, vector<8x128xf32>, vector<8x128xf32> -> vector<8x512xf32>
    %149 = tpu.concatenate %76, %148 in 0 : vector<8x512xf32>, vector<8x512xf32> -> vector<16x512xf32>
    %150 = arith.truncf %149 : vector<16x512xf32> to vector<16x512xbf16>
    %c0_39 = arith.constant 0 : index
    %c0_40 = arith.constant 0 : index
    %151 = vector.load %arg4[%c0_39, %c0_40] : memref<512x32xbf16, #tpu.memory_space<vmem>>, vector<512x32xbf16>
    %cst_41 = arith.constant dense<0.000000e+00> : vector<16x32xf32>
    %152 = tpu.matmul %150, %151, %cst_41 {dimension_numbers = #tpu.dot_dimension_numbers<[1], [0], [0], [1], [0, 0, 1, 1], [], []>} : vector<16x512xbf16>, vector<512x32xbf16>, vector<16x32xf32> -> vector<16x32xf32>
    %c0_42 = arith.constant 0 : index
    %c0_43 = arith.constant 0 : index
    %153 = vector.load %arg5[%c0_42, %c0_43] : memref<1x32xf32, #tpu.memory_space<vmem>>, vector<1x32xf32>
    %154 = vector.broadcast %153 : vector<1x32xf32> to vector<16x32xf32>
    %155 = arith.addf %152, %154 : vector<16x32xf32>
    %c0_44 = arith.constant 0 : index
    %c0_45 = arith.constant 0 : index
    %156 = vector.load %arg6[%c0_44, %c0_45] : memref<16x32xf32, #tpu.memory_space<vmem>>, vector<16x32xf32>
    tpu.vector_store %arg6[%c0_44, %c0_45], %155 {strides = array<i32>} : memref<16x32xf32, #tpu.memory_space<vmem>>, vector<16x32xf32>,
    return
  }
  func.func @transform_0(%arg0: i32) -> (i32, i32) {
    %c0_i32 = arith.constant 0 : i32
    %c0_i32_0 = arith.constant 0 : i32
    %c0_i32_1 = arith.constant 0 : i32
    return %c0_i32, %c0_i32_0 : i32, i32
  }
  func.func @transform_1(%arg0: i32) -> (i32, i32) {
    %c0_i32 = arith.constant 0 : i32
    %c0_i32_0 = arith.constant 0 : i32
    %c0_i32_1 = arith.constant 0 : i32
    return %c0_i32, %c0_i32_0 : i32, i32
  }
  func.func @transform_2(%arg0: i32) -> (i32, i32) {
    %c0_i32 = arith.constant 0 : i32
    %c0_i32_0 = arith.constant 0 : i32
    %c0_i32_1 = arith.constant 0 : i32
    return %c0_i32, %c0_i32_0 : i32, i32
  }
  func.func @transform_3(%arg0: i32) -> (i32, i32) {
    %c0_i32 = arith.constant 0 : i32
    %c0_i32_0 = arith.constant 0 : i32
    %c0_i32_1 = arith.constant 0 : i32
    return %c0_i32, %c0_i32_0 : i32, i32
  }
  func.func @transform_4(%arg0: i32) -> (i32, i32) {
    %c0_i32 = arith.constant 0 : i32
    %c0_i32_0 = arith.constant 0 : i32
    %c0_i32_1 = arith.constant 0 : i32
    return %c0_i32, %c0_i32_0 : i32, i32
  }
  func.func @transform_5(%arg0: i32) -> (i32, i32) {
    %c0_i32 = arith.constant 0 : i32
    %c0_i32_0 = arith.constant 0 : i32
    %c0_i32_1 = arith.constant 0 : i32
    return %c0_i32, %c0_i32_0 : i32, i32
  }
}

</mosaic_0001>

<llo_original>
// kernel: tpu_custom_call.1
$region0: #{tpu_custom_call.1}
  #allocation0 [shape = 'u32[]', space=smem, size = 0x4, offset = 0x4, fixed_abs, tag = 'smem constant byte address 0x4 - core index']
  #allocation1 [shape = 'u32[72,128]{1,0:T(1,128)}', space=vmem, size = 0x9000, scoped, tag = 'internal scratch']
  %s0 = inlined_call_operand.vmem [shape: f32[16,32], index: 0, kind: input, shape index: {}]
  %s1 = inlined_call_operand.vmem [shape: bf16[32,1024], index: 1, kind: input, shape index: {}]
  %s2 = inlined_call_operand.vmem [shape: bf16[512,32], index: 2, kind: input, shape index: {}]
  %s3 = inlined_call_operand.vmem [shape: bf16[512,32], index: 3, kind: input, shape index: {}]
  %s4 = inlined_call_operand.vmem [shape: f32[1,32], index: 4, kind: input, shape index: {}]
  %s5 = inlined_call_operand.hbm [shape: f32[16,32], index: 5, kind: output, shape index: {}]
  %s6 = sld [smem:[#allocation0]]
  $region30: #{tpu_custom_call.1} parent=0
    _
  %s8 = ssub.s32 1, %s6
  %s9 = scalar_select 0, %s8, %s6
  $region1: #{tpu_custom_call.1} parent=0
    #allocation2 [shape = 'u8[8192]{0}', space=vmem, size = 0x2000, scoped, tag = 'output window, operand 0, single buffered']
    #allocation3 [shape = 's32[1]{0}', space=sflag, size = 0x4, scoped, tag = 'scoped memory for tpu_custom_call.1']
    %10 = vsyncpa [#allocation3], 0
    // Predicated region
    $region2: #{tpu_custom_call.1} parent=1 // pred_check
      _
    $region3: #{tpu_custom_call.1} parent=1 // pred_check_branch
      %12 = sbr.rel (0) target = $region5
    $region4: #{tpu_custom_call.1} parent=1 // pred_region
      _
    $region5: #{tpu_custom_call.1} parent=1 // pred_fallthru
      _
    // Predicated region
    $region6: #{tpu_custom_call.1} parent=1 // pred_check
      _
    $region7: #{tpu_custom_call.1} parent=1 // pred_check_branch
      %14 = sbr.rel (0) target = $region9
    $region8: #{tpu_custom_call.1} parent=1 // pred_region
      _
    $region9: #{tpu_custom_call.1} parent=1 // pred_fallthru
      _
    // Predicated region
    $region10: #{tpu_custom_call.1} parent=1 // pred_check
      _
    $region11: #{tpu_custom_call.1} parent=1 // pred_check_branch
      %16 = sbr.rel (0) target = $region13
    $region12: #{tpu_custom_call.1} parent=1 // pred_region
      _
    $region13: #{tpu_custom_call.1} parent=1 // pred_fallthru
      _
    // Predicated region
    $region14: #{tpu_custom_call.1} parent=1 // pred_check
      _
    $region15: #{tpu_custom_call.1} parent=1 // pred_check_branch
      %18 = sbr.rel (0) target = $region17
    $region16: #{tpu_custom_call.1} parent=1 // pred_region
      _
    $region17: #{tpu_custom_call.1} parent=1 // pred_fallthru
      _
    // Predicated region
    $region18: #{tpu_custom_call.1} parent=1 // pred_check
      _
    $region19: #{tpu_custom_call.1} parent=1 // pred_check_branch
      %20 = sbr.rel (0) target = $region21
    $region20: #{tpu_custom_call.1} parent=1 // pred_region
      _
    $region21: #{tpu_custom_call.1} parent=1 // pred_fallthru
      _
    %v22 = vld [vmem:[%s0] sm:$0xff]
    %v23 = vld [vmem:[%s0 + $0x8] sm:$0xff]
    %v24 = vpack.c.bf16 %v23, %v22
    %v25 = vld [vmem:[%s1] sm:$0xff]
    %v26 = vld [vmem:[%s1 + $0x8] sm:$0xff]
    %v27 = vld [vmem:[%s1 + $0x10] sm:$0xff]
    %v28 = vld [vmem:[%s1 + $0x18] sm:$0xff]
    %v29 = vld [vmem:[%s1 + $0x20] sm:$0xff]
    %v30 = vld [vmem:[%s1 + $0x28] sm:$0xff]
    %v31 = vld [vmem:[%s1 + $0x30] sm:$0xff]
    %v32 = vld [vmem:[%s1 + $0x38] sm:$0xff]
    %v33 = vld [vmem:[%s1 + $0x40] sm:$0xff]
    %v34 = vld [vmem:[%s1 + $0x48] sm:$0xff]
    %v35 = vld [vmem:[%s1 + $0x50] sm:$0xff]
    %v36 = vld [vmem:[%s1 + $0x58] sm:$0xff]
    %v37 = vld [vmem:[%s1 + $0x60] sm:$0xff]
    %v38 = vld [vmem:[%s1 + $0x68] sm:$0xff]
    %v39 = vld [vmem:[%s1 + $0x70] sm:$0xff]
    %v40 = vld [vmem:[%s1 + $0x78] sm:$0xff]
    %v57 = vunpack.c.l.b16 %v25
    %v58 = vunpack.c.h.b16 %v25
    %v59 = vunpack.c.l.b16 %v26
    %v60 = vunpack.c.h.b16 %v26
    %v61 = vunpack.c.l.b16 %v27
    %v62 = vunpack.c.h.b16 %v27
    %v63 = vunpack.c.l.b16 %v28
    %v64 = vunpack.c.h.b16 %v28
    %v65 = vunpack.c.l.b16 %v29
    %v66 = vunpack.c.h.b16 %v29
    %v67 = vunpack.c.l.b16 %v30
    %v68 = vunpack.c.h.b16 %v30
    %v69 = vunpack.c.l.b16 %v31
    %v70 = vunpack.c.h.b16 %v31
    %v71 = vunpack.c.l.b16 %v32
    %v72 = vunpack.c.h.b16 %v32
    %v73 = vunpack.c.l.b16 %v33
    %v74 = vunpack.c.h.b16 %v33
    %v75 = vunpack.c.l.b16 %v34
    %v76 = vunpack.c.h.b16 %v34
    %v77 = vunpack.c.l.b16 %v35
    %v78 = vunpack.c.h.b16 %v35
    %v79 = vunpack.c.l.b16 %v36
    %v80 = vunpack.c.h.b16 %v36
    %v81 = vunpack.c.l.b16 %v37
    %v82 = vunpack.c.h.b16 %v37
    %v83 = vunpack.c.l.b16 %v38
    %v84 = vunpack.c.h.b16 %v38
    %v85 = vunpack.c.l.b16 %v39
    %v86 = vunpack.c.h.b16 %v39
    %v87 = vunpack.c.l.b16 %v40
    %v88 = vunpack.c.h.b16 %v40
    %v89 = vpack.c.b16 %v65, %v57
    %v90 = vpack.c.b16 %v66, %v58
    %v91 = vpack.c.b16 %v67, %v59
    %v92 = vpack.c.b16 %v68, %v60
    %v93 = vpack.c.b16 %v69, %v61
    %v94 = vpack.c.b16 %v70, %v62
    %v95 = vpack.c.b16 %v71, %v63
    %v96 = vpack.c.b16 %v72, %v64
    %v97 = vpack.c.b16 %v81, %v73
    %v98 = vpack.c.b16 %v82, %v74
    %v99 = vpack.c.b16 %v83, %v75
    %v100 = vpack.c.b16 %v84, %v76
    %v101 = vpack.c.b16 %v85, %v77
    %v102 = vpack.c.b16 %v86, %v78
    %v103 = vpack.c.b16 %v87, %v79
    %v104 = vpack.c.b16 %v88, %v80
    %vm121 = vcmask 261120
    %v123 = vsel %vm121, %v24, 0
    %125 = vmatpush.bf16.msra.mxu0 0
    %126 = vmatpush.bf16.msra.mxu0 0
    %127 = vmatpush.bf16.msra.mxu0 0
    %128 = vmatpush.bf16.msra.mxu0 0
    %129 = vmatpush.bf16.msra.mxu0 0
    %130 = vmatpush.bf16.msra.mxu0 0
    %131 = vmatpush.bf16.msra.mxu0 %v97
    %132 = vmatpush.bf16.msra.mxu0 %v89
    %133 = vmatmul.bf16.gmra.mxu0 %v123
    %v134 = vpop.f32.mrf.mxu0
    %v135 = vadd.f32 0.0, %v134
    %v136 = vpop.f32.mrf.mxu0
    %v137 = vadd.f32 0.0, %v136
    %138 = vdwg.mxu0
    %139 = vmatpush.bf16.msra.mxu0 0
    %140 = vmatpush.bf16.msra.mxu0 0
    %141 = vmatpush.bf16.msra.mxu0 0
    %142 = vmatpush.bf16.msra.mxu0 0
    %143 = vmatpush.bf16.msra.mxu0 0
    %144 = vmatpush.bf16.msra.mxu0 0
    %145 = vmatpush.bf16.msra.mxu0 %v98
    %146 = vmatpush.bf16.msra.mxu0 %v90
    %147 = vmatmul.bf16.gmra.mxu0 %v123
    %v148 = vpop.f32.mrf.mxu0
    %v149 = vadd.f32 0.0, %v148
    %v150 = vpop.f32.mrf.mxu0
    %v151 = vadd.f32 0.0, %v150
    %152 = vdwg.mxu0
    %153 = vmatpush.bf16.msra.mxu0 0
    %154 = vmatpush.bf16.msra.mxu0 0
    %155 = vmatpush.bf16.msra.mxu0 0
    %156 = vmatpush.bf16.msra.mxu0 0
    %157 = vmatpush.bf16.msra.mxu0 0
    %158 = vmatpush.bf16.msra.mxu0 0
    %159 = vmatpush.bf16.msra.mxu0 %v99
    %160 = vmatpush.bf16.msra.mxu0 %v91
    %161 = vmatmul.bf16.gmra.mxu0 %v123
    %v162 = vpop.f32.mrf.mxu0
    %v163 = vadd.f32 0.0, %v162
    %v164 = vpop.f32.mrf.mxu0
    %v165 = vadd.f32 0.0, %v164
    %166 = vdwg.mxu0
    %167 = vmatpush.bf16.msra.mxu0 0
    %168 = vmatpush.bf16.msra.mxu0 0
    %169 = vmatpush.bf16.msra.mxu0 0
    %170 = vmatpush.bf16.msra.mxu0 0
    %171 = vmatpush.bf16.msra.mxu0 0
    %172 = vmatpush.bf16.msra.mxu0 0
    %173 = vmatpush.bf16.msra.mxu0 %v100
    %174 = vmatpush.bf16.msra.mxu0 %v92
    %175 = vmatmul.bf16.gmra.mxu0 %v123
    %v176 = vpop.f32.mrf.mxu0
    %v177 = vadd.f32 0.0, %v176
    %v178 = vpop.f32.mrf.mxu0
    %v179 = vadd.f32 0.0, %v178
    %180 = vdwg.mxu0
    %181 = vmatpush.bf16.msra.mxu0 0
    %182 = vmatpush.bf16.msra.mxu0 0
    %183 = vmatpush.bf16.msra.mxu0 0
    %184 = vmatpush.bf16.msra.mxu0 0
    %185 = vmatpush.bf16.msra.mxu0 0
    %186 = vmatpush.bf16.msra.mxu0 0
    %187 = vmatpush.bf16.msra.mxu0 %v101
    %188 = vmatpush.bf16.msra.mxu0 %v93
    %189 = vmatmul.bf16.gmra.mxu0 %v123
    %v190 = vpop.f32.mrf.mxu0
    %v191 = vadd.f32 0.0, %v190
    %v192 = vpop.f32.mrf.mxu0
    %v193 = vadd.f32 0.0, %v192
    %194 = vdwg.mxu0
    %195 = vmatpush.bf16.msra.mxu0 0
    %196 = vmatpush.bf16.msra.mxu0 0
    %197 = vmatpush.bf16.msra.mxu0 0
    %198 = vmatpush.bf16.msra.mxu0 0
    %199 = vmatpush.bf16.msra.mxu0 0
    %200 = vmatpush.bf16.msra.mxu0 0
    %201 = vmatpush.bf16.msra.mxu0 %v102
    %202 = vmatpush.bf16.msra.mxu0 %v94
    %203 = vmatmul.bf16.gmra.mxu0 %v123
    %v204 = vpop.f32.mrf.mxu0
    %v205 = vadd.f32 0.0, %v204
    %v206 = vpop.f32.mrf.mxu0
    %v207 = vadd.f32 0.0, %v206
    %208 = vdwg.mxu0
    %209 = vmatpush.bf16.msra.mxu0 0
    %210 = vmatpush.bf16.msra.mxu0 0
    %211 = vmatpush.bf16.msra.mxu0 0
    %212 = vmatpush.bf16.msra.mxu0 0
    %213 = vmatpush.bf16.msra.mxu0 0
    %214 = vmatpush.bf16.msra.mxu0 0
    %215 = vmatpush.bf16.msra.mxu0 %v103
    %216 = vmatpush.bf16.msra.mxu0 %v95
    %217 = vmatmul.bf16.gmra.mxu0 %v123
    %v218 = vpop.f32.mrf.mxu0
    %v219 = vadd.f32 0.0, %v218
    %v220 = vpop.f32.mrf.mxu0
    %v221 = vadd.f32 0.0, %v220
    %222 = vdwg.mxu0
    %223 = vmatpush.bf16.msra.mxu0 0
    %224 = vmatpush.bf16.msra.mxu0 0
    %225 = vmatpush.bf16.msra.mxu0 0
    %226 = vmatpush.bf16.msra.mxu0 0
    %227 = vmatpush.bf16.msra.mxu0 0
    %228 = vmatpush.bf16.msra.mxu0 0
    %229 = vmatpush.bf16.msra.mxu0 %v104
    %230 = vmatpush.bf16.msra.mxu0 %v96
    %231 = vmatmul.bf16.gmra.mxu0 %v123
    %v232 = vpop.f32.mrf.mxu0
    %v233 = vadd.f32 0.0, %v232
    %v234 = vpop.f32.mrf.mxu0
    %v235 = vadd.f32 0.0, %v234
    %236 = vdwg.mxu0
    %v237 = vld [vmem:[%s2] sm:$0xf]
    %v238 = vld [vmem:[%s2 + $0x4] sm:$0xf]
    %v239 = vld [vmem:[%s2 + $0x8] sm:$0xf]
    %v240 = vld [vmem:[%s2 + $0xc] sm:$0xf]
    %v241 = vld [vmem:[%s2 + $0x10] sm:$0xf]
    %v242 = vld [vmem:[%s2 + $0x14] sm:$0xf]
    %v243 = vld [vmem:[%s2 + $0x18] sm:$0xf]
    %v244 = vld [vmem:[%s2 + $0x1c] sm:$0xf]
    %v245 = vld [vmem:[%s2 + $0x20] sm:$0xf]
    %v246 = vld [vmem:[%s2 + $0x24] sm:$0xf]
    %v247 = vld [vmem:[%s2 + $0x28] sm:$0xf]
    %v248 = vld [vmem:[%s2 + $0x2c] sm:$0xf]
    %v249 = vld [vmem:[%s2 + $0x30] sm:$0xf]
    %v250 = vld [vmem:[%s2 + $0x34] sm:$0xf]
    %v251 = vld [vmem:[%s2 + $0x38] sm:$0xf]
    %v252 = vld [vmem:[%s2 + $0x3c] sm:$0xf]
    %v253 = vld [vmem:[%s2 + $0x40] sm:$0xf]
    %v254 = vld [vmem:[%s2 + $0x44] sm:$0xf]
    %v255 = vld [vmem:[%s2 + $0x48] sm:$0xf]
    %v256 = vld [vmem:[%s2 + $0x4c] sm:$0xf]
    %v257 = vld [vmem:[%s2 + $0x50] sm:$0xf]
    %v258 = vld [vmem:[%s2 + $0x54] sm:$0xf]
    %v259 = vld [vmem:[%s2 + $0x58] sm:$0xf]
    %v260 = vld [vmem:[%s2 + $0x5c] sm:$0xf]
    %v261 = vld [vmem:[%s2 + $0x60] sm:$0xf]
    %v262 = vld [vmem:[%s2 + $0x64] sm:$0xf]
    %v263 = vld [vmem:[%s2 + $0x68] sm:$0xf]
    %v264 = vld [vmem:[%s2 + $0x6c] sm:$0xf]
    %v265 = vld [vmem:[%s2 + $0x70] sm:$0xf]
    %v266 = vld [vmem:[%s2 + $0x74] sm:$0xf]
    %v267 = vld [vmem:[%s2 + $0x78] sm:$0xf]
    %v268 = vld [vmem:[%s2 + $0x7c] sm:$0xf]
    %v269 = vld [vmem:[%s2 + $0x80] sm:$0xf]
    %v270 = vld [vmem:[%s2 + $0x84] sm:$0xf]
    %v271 = vld [vmem:[%s2 + $0x88] sm:$0xf]
    %v272 = vld [vmem:[%s2 + $0x8c] sm:$0xf]
    %v273 = vld [vmem:[%s2 + $0x90] sm:$0xf]
    %v274 = vld [vmem:[%s2 + $0x94] sm:$0xf]
    %v275 = vld [vmem:[%s2 + $0x98] sm:$0xf]
    %v276 = vld [vmem:[%s2 + $0x9c] sm:$0xf]
    %v277 = vld [vmem:[%s2 + $0xa0] sm:$0xf]
    %v278 = vld [vmem:[%s2 + $0xa4] sm:$0xf]
    %v279 = vld [vmem:[%s2 + $0xa8] sm:$0xf]
    %v280 = vld [vmem:[%s2 + $0xac] sm:$0xf]
    %v281 = vld [vmem:[%s2 + $0xb0] sm:$0xf]
    %v282 = vld [vmem:[%s2 + $0xb4] sm:$0xf]
    %v283 = vld [vmem:[%s2 + $0xb8] sm:$0xf]
    %v284 = vld [vmem:[%s2 + $0xbc] sm:$0xf]
    %v285 = vld [vmem:[%s2 + $0xc0] sm:$0xf]
    %v286 = vld [vmem:[%s2 + $0xc4] sm:$0xf]
    %v287 = vld [vmem:[%s2 + $0xc8] sm:$0xf]
    %v288 = vld [vmem:[%s2 + $0xcc] sm:$0xf]
    %v289 = vld [vmem:[%s2 + $0xd0] sm:$0xf]
    %v290 = vld [vmem:[%s2 + $0xd4] sm:$0xf]
    %v291 = vld [vmem:[%s2 + $0xd8] sm:$0xf]
    %v292 = vld [vmem:[%s2 + $0xdc] sm:$0xf]
    %v293 = vld [vmem:[%s2 + $0xe0] sm:$0xf]
    %v294 = vld [vmem:[%s2 + $0xe4] sm:$0xf]
    %v295 = vld [vmem:[%s2 + $0xe8] sm:$0xf]
    %v296 = vld [vmem:[%s2 + $0xec] sm:$0xf]
    %v297 = vld [vmem:[%s2 + $0xf0] sm:$0xf]
    %v298 = vld [vmem:[%s2 + $0xf4] sm:$0xf]
    %v299 = vld [vmem:[%s2 + $0xf8] sm:$0xf]
    %v300 = vld [vmem:[%s2 + $0xfc] sm:$0xf]
    %v301 = vpack.c.bf16 %v149, %v135
    %v302 = vpack.c.bf16 %v177, %v163
    %v303 = vpack.c.bf16 %v205, %v191
    %v304 = vpack.c.bf16 %v233, %v219
    %305 = vxpose.xlu0.b32.start [1/16] %v22, 128
    %306 = vxpose.xlu0.b32.cont [2/16] 0.0, 128
    %307 = vxpose.xlu0.b32.cont [3/16] 0.0, 128
    %308 = vxpose.xlu0.b32.cont [4/16] 0.0, 128
    %309 = vxpose.xlu0.b32.cont [5/16] 0.0, 128
    %310 = vxpose.xlu0.b32.cont [6/16] 0.0, 128
    %311 = vxpose.xlu0.b32.cont [7/16] 0.0, 128
    %312 = vxpose.xlu0.b32.cont [8/16] 0.0, 128
    %313 = vxpose.xlu0.b32.cont [9/16] 0.0, 128
    %314 = vxpose.xlu0.b32.cont [10/16] 0.0, 128
    %315 = vxpose.xlu0.b32.cont [11/16] 0.0, 128
    %316 = vxpose.xlu0.b32.cont [12/16] 0.0, 128
    %317 = vxpose.xlu0.b32.cont [13/16] 0.0, 128
    %318 = vxpose.xlu0.b32.cont [14/16] 0.0, 128
    %319 = vxpose.xlu0.b32.cont [15/16] 0.0, 128
    %320 = vxpose.xlu0.b32.end [16/16] 0.0, 128
    %v321 = vpop.trf.xlu0
    %v322 = vpop.trf.xlu0
    %v323 = vpop.trf.xlu0
    %v324 = vpop.trf.xlu0
    %v325 = vpop.trf.xlu0
    %v326 = vpop.trf.xlu0
    %v327 = vpop.trf.xlu0
    %v328 = vpop.trf.xlu0
    %v329 = vpop.trf.xlu0
    %v330 = vpop.trf.xlu0
    %v331 = vpop.trf.xlu0
    %v332 = vpop.trf.xlu0
    %v333 = vpop.trf.xlu0
    %v334 = vpop.trf.xlu0
    %v335 = vpop.trf.xlu0
    %v336 = vpop.trf.xlu0
    %v337 = vpack.c.bf16 %v322, %v321
    %v338 = vpack.c.bf16 %v324, %v323
    %v403 = vunpack.c.l.b16 %v237
    %v404 = vunpack.c.l.b16 %v238
    %v405 = vunpack.c.l.b16 %v239
    %v406 = vunpack.c.l.b16 %v240
    %v407 = vunpack.c.l.b16 %v241
    %v408 = vunpack.c.l.b16 %v242
    %v409 = vunpack.c.l.b16 %v243
    %v410 = vunpack.c.l.b16 %v244
    %v411 = vunpack.c.l.b16 %v245
    %v412 = vunpack.c.l.b16 %v246
    %v413 = vunpack.c.l.b16 %v247
    %v414 = vunpack.c.l.b16 %v248
    %v415 = vunpack.c.l.b16 %v249
    %v416 = vunpack.c.l.b16 %v250
    %v417 = vunpack.c.l.b16 %v251
    %v418 = vunpack.c.l.b16 %v252
    %v419 = vunpack.c.l.b16 %v253
    %v420 = vunpack.c.l.b16 %v254
    %v421 = vunpack.c.l.b16 %v255
    %v422 = vunpack.c.l.b16 %v256
    %v423 = vunpack.c.l.b16 %v257
    %v424 = vunpack.c.l.b16 %v258
    %v425 = vunpack.c.l.b16 %v259
    %v426 = vunpack.c.l.b16 %v260
    %v427 = vunpack.c.l.b16 %v261
    %v428 = vunpack.c.l.b16 %v262
    %v429 = vunpack.c.l.b16 %v263
    %v430 = vunpack.c.l.b16 %v264
    %v431 = vunpack.c.l.b16 %v265
    %v432 = vunpack.c.l.b16 %v266
    %v433 = vunpack.c.l.b16 %v267
    %v434 = vunpack.c.l.b16 %v268
    %v435 = vunpack.c.l.b16 %v269
    %v436 = vunpack.c.l.b16 %v270
    %v437 = vunpack.c.l.b16 %v271
    %v438 = vunpack.c.l.b16 %v272
    %v439 = vunpack.c.l.b16 %v273
    %v440 = vunpack.c.l.b16 %v274
    %v441 = vunpack.c.l.b16 %v275
    %v442 = vunpack.c.l.b16 %v276
    %v443 = vunpack.c.l.b16 %v277
    %v444 = vunpack.c.l.b16 %v278
    %v445 = vunpack.c.l.b16 %v279
    %v446 = vunpack.c.l.b16 %v280
    %v447 = vunpack.c.l.b16 %v281
    %v448 = vunpack.c.l.b16 %v282
    %v449 = vunpack.c.l.b16 %v283
    %v450 = vunpack.c.l.b16 %v284
    %v451 = vunpack.c.l.b16 %v285
    %v452 = vunpack.c.l.b16 %v286
    %v453 = vunpack.c.l.b16 %v287
    %v454 = vunpack.c.l.b16 %v288
    %v455 = vunpack.c.l.b16 %v289
    %v456 = vunpack.c.l.b16 %v290
    %v457 = vunpack.c.l.b16 %v291
    %v458 = vunpack.c.l.b16 %v292
    %v459 = vunpack.c.l.b16 %v293
    %v460 = vunpack.c.l.b16 %v294
    %v461 = vunpack.c.l.b16 %v295
    %v462 = vunpack.c.l.b16 %v296
    %v463 = vunpack.c.l.b16 %v297
    %v464 = vunpack.c.l.b16 %v298
    %v465 = vunpack.c.l.b16 %v299
    %v466 = vunpack.c.l.b16 %v300
    %v467 = vpack.c.b16 %v404, %v403
    %v468 = vpack.c.b16 %v406, %v405
    %v469 = vpack.c.b16 %v408, %v407
    %v470 = vpack.c.b16 %v410, %v409
    %v471 = vpack.c.b16 %v412, %v411
    %v472 = vpack.c.b16 %v414, %v413
    %v473 = vpack.c.b16 %v416, %v415
    %v474 = vpack.c.b16 %v418, %v417
    %v475 = vpack.c.b16 %v420, %v419
    %v476 = vpack.c.b16 %v422, %v421
    %v477 = vpack.c.b16 %v424, %v423
    %v478 = vpack.c.b16 %v426, %v425
    %v479 = vpack.c.b16 %v428, %v427
    %v480 = vpack.c.b16 %v430, %v429
    %v481 = vpack.c.b16 %v432, %v431
    %v482 = vpack.c.b16 %v434, %v433
    %v483 = vpack.c.b16 %v436, %v435
    %v484 = vpack.c.b16 %v438, %v437
    %v485 = vpack.c.b16 %v440, %v439
    %v486 = vpack.c.b16 %v442, %v441
    %v487 = vpack.c.b16 %v444, %v443
    %v488 = vpack.c.b16 %v446, %v445
    %v489 = vpack.c.b16 %v448, %v447
    %v490 = vpack.c.b16 %v450, %v449
    %v491 = vpack.c.b16 %v452, %v451
    %v492 = vpack.c.b16 %v454, %v453
    %v493 = vpack.c.b16 %v456, %v455
    %v494 = vpack.c.b16 %v458, %v457
    %v495 = vpack.c.b16 %v460, %v459
    %v496 = vpack.c.b16 %v462, %v461
    %v497 = vpack.c.b16 %v464, %v463
    %v498 = vpack.c.b16 %v466, %v465
    %v500 = vsel %vm121, %v467, 0
    %v503 = vsel %vm121, %v468, 0
    %v506 = vsel %vm121, %v469, 0
    %v509 = vsel %vm121, %v470, 0
    %v512 = vsel %vm121, %v471, 0
    %v515 = vsel %vm121, %v472, 0
    %v518 = vsel %vm121, %v473, 0
    %v521 = vsel %vm121, %v474, 0
    %v524 = vsel %vm121, %v475, 0
    %v527 = vsel %vm121, %v476, 0
    %v530 = vsel %vm121, %v477, 0
    %v533 = vsel %vm121, %v478, 0
    %v536 = vsel %vm121, %v479, 0
    %v539 = vsel %vm121, %v480, 0
    %v542 = vsel %vm121, %v481, 0
    %v545 = vsel %vm121, %v482, 0
    %v548 = vsel %vm121, %v483, 0
    %v551 = vsel %vm121, %v484, 0
    %v554 = vsel %vm121, %v485, 0
    %v557 = vsel %vm121, %v486, 0
    %v560 = vsel %vm121, %v487, 0
    %v563 = vsel %vm121, %v488, 0
    %v566 = vsel %vm121, %v489, 0
    %v569 = vsel %vm121, %v490, 0
    %v572 = vsel %vm121, %v491, 0
    %v575 = vsel %vm121, %v492, 0
    %v578 = vsel %vm121, %v493, 0
    %v581 = vsel %vm121, %v494, 0
    %v584 = vsel %vm121, %v495, 0
    %v587 = vsel %vm121, %v496, 0
    %v590 = vsel %vm121, %v497, 0
    %v593 = vsel %vm121, %v498, 0
    %595 = vmatpush.bf16.msra.mxu0 0
    %596 = vmatpush.bf16.msra.mxu0 0
    %597 = vmatpush.bf16.msra.mxu0 0
    %598 = vmatpush.bf16.msra.mxu0 0
    %599 = vmatpush.bf16.msra.mxu0 0
    %600 = vmatpush.bf16.msra.mxu0 0
    %601 = vmatpush.bf16.msra.mxu0 %v338
    %602 = vmatpush.bf16.msra.mxu0 %v337
    %603 = vmatmul.bf16.gmra.mxu0 %v500
    %v604 = vpop.f32.mrf.mxu0
    %v605 = vadd.f32 0.0, %v604
    %v606 = vpop.f32.mrf.mxu0
    %v607 = vadd.f32 0.0, %v606
    %608 = vmatmul.bf16.gmra.mxu0 %v503
    %v609 = vpop.f32.mrf.mxu0
    %v610 = vadd.f32 0.0, %v609
    %v611 = vpop.f32.mrf.mxu0
    %v612 = vadd.f32 0.0, %v611
    %613 = vmatmul.bf16.gmra.mxu0 %v506
    %v614 = vpop.f32.mrf.mxu0
    %v615 = vadd.f32 0.0, %v614
    %v616 = vpop.f32.mrf.mxu0
    %v617 = vadd.f32 0.0, %v616
    %618 = vmatmul.bf16.gmra.mxu0 %v509
    %v619 = vpop.f32.mrf.mxu0
    %v620 = vadd.f32 0.0, %v619
    %v621 = vpop.f32.mrf.mxu0
    %v622 = vadd.f32 0.0, %v621
    %623 = vmatmul.bf16.gmra.mxu0 %v512
    %v624 = vpop.f32.mrf.mxu0
    %v625 = vadd.f32 0.0, %v624
    %v626 = vpop.f32.mrf.mxu0
    %v627 = vadd.f32 0.0, %v626
    %628 = vmatmul.bf16.gmra.mxu0 %v515
    %v629 = vpop.f32.mrf.mxu0
    %v630 = vadd.f32 0.0, %v629
    %v631 = vpop.f32.mrf.mxu0
    %v632 = vadd.f32 0.0, %v631
    %633 = vmatmul.bf16.gmra.mxu0 %v518
    %v634 = vpop.f32.mrf.mxu0
    %v635 = vadd.f32 0.0, %v634
    %v636 = vpop.f32.mrf.mxu0
    %v637 = vadd.f32 0.0, %v636
    %638 = vmatmul.bf16.gmra.mxu0 %v521
    %v639 = vpop.f32.mrf.mxu0
    %v640 = vadd.f32 0.0, %v639
    %v641 = vpop.f32.mrf.mxu0
    %v642 = vadd.f32 0.0, %v641
    %643 = vmatmul.bf16.gmra.mxu0 %v524
    %v644 = vpop.f32.mrf.mxu0
    %v645 = vadd.f32 0.0, %v644
    %v646 = vpop.f32.mrf.mxu0
    %v647 = vadd.f32 0.0, %v646
    %648 = vmatmul.bf16.gmra.mxu0 %v527
    %v649 = vpop.f32.mrf.mxu0
    %v650 = vadd.f32 0.0, %v649
    %v651 = vpop.f32.mrf.mxu0
    %v652 = vadd.f32 0.0, %v651
    %653 = vmatmul.bf16.gmra.mxu0 %v530
    %v654 = vpop.f32.mrf.mxu0
    %v655 = vadd.f32 0.0, %v654
    %v656 = vpop.f32.mrf.mxu0
    %v657 = vadd.f32 0.0, %v656
    %658 = vmatmul.bf16.gmra.mxu0 %v533
    %v659 = vpop.f32.mrf.mxu0
    %v660 = vadd.f32 0.0, %v659
    %v661 = vpop.f32.mrf.mxu0
    %v662 = vadd.f32 0.0, %v661
    %663 = vmatmul.bf16.gmra.mxu0 %v536
    %v664 = vpop.f32.mrf.mxu0
    %v665 = vadd.f32 0.0, %v664
    %v666 = vpop.f32.mrf.mxu0
    %v667 = vadd.f32 0.0, %v666
    %668 = vmatmul.bf16.gmra.mxu0 %v539
    %v669 = vpop.f32.mrf.mxu0
    %v670 = vadd.f32 0.0, %v669
    %v671 = vpop.f32.mrf.mxu0
    %v672 = vadd.f32 0.0, %v671
    %673 = vmatmul.bf16.gmra.mxu0 %v542
    %v674 = vpop.f32.mrf.mxu0
    %v675 = vadd.f32 0.0, %v674
    %v676 = vpop.f32.mrf.mxu0
    %v677 = vadd.f32 0.0, %v676
    %678 = vmatmul.bf16.gmra.mxu0 %v545
    %v679 = vpop.f32.mrf.mxu0
    %v680 = vadd.f32 0.0, %v679
    %v681 = vpop.f32.mrf.mxu0
    %v682 = vadd.f32 0.0, %v681
    %683 = vmatmul.bf16.gmra.mxu0 %v548
    %v684 = vpop.f32.mrf.mxu0
    %v685 = vadd.f32 0.0, %v684
    %v686 = vpop.f32.mrf.mxu0
    %v687 = vadd.f32 0.0, %v686
    %688 = vmatmul.bf16.gmra.mxu0 %v551
    %v689 = vpop.f32.mrf.mxu0
    %v690 = vadd.f32 0.0, %v689
    %v691 = vpop.f32.mrf.mxu0
    %v692 = vadd.f32 0.0, %v691
    %693 = vmatmul.bf16.gmra.mxu0 %v554
    %v694 = vpop.f32.mrf.mxu0
    %v695 = vadd.f32 0.0, %v694
    %v696 = vpop.f32.mrf.mxu0
    %v697 = vadd.f32 0.0, %v696
    %698 = vmatmul.bf16.gmra.mxu0 %v557
    %v699 = vpop.f32.mrf.mxu0
    %v700 = vadd.f32 0.0, %v699
    %v701 = vpop.f32.mrf.mxu0
    %v702 = vadd.f32 0.0, %v701
    %703 = vmatmul.bf16.gmra.mxu0 %v560
    %v704 = vpop.f32.mrf.mxu0
    %v705 = vadd.f32 0.0, %v704
    %v706 = vpop.f32.mrf.mxu0
    %v707 = vadd.f32 0.0, %v706
    %708 = vmatmul.bf16.gmra.mxu0 %v563
    %v709 = vpop.f32.mrf.mxu0
    %v710 = vadd.f32 0.0, %v709
    %v711 = vpop.f32.mrf.mxu0
    %v712 = vadd.f32 0.0, %v711
    %713 = vmatmul.bf16.gmra.mxu0 %v566
    %v714 = vpop.f32.mrf.mxu0
    %v715 = vadd.f32 0.0, %v714
    %v716 = vpop.f32.mrf.mxu0
    %v717 = vadd.f32 0.0, %v716
    %718 = vmatmul.bf16.gmra.mxu0 %v569
    %v719 = vpop.f32.mrf.mxu0
    %v720 = vadd.f32 0.0, %v719
    %v721 = vpop.f32.mrf.mxu0
    %v722 = vadd.f32 0.0, %v721
    %723 = vmatmul.bf16.gmra.mxu0 %v572
    %v724 = vpop.f32.mrf.mxu0
    %v725 = vadd.f32 0.0, %v724
    %v726 = vpop.f32.mrf.mxu0
    %v727 = vadd.f32 0.0, %v726
    %728 = vmatmul.bf16.gmra.mxu0 %v575
    %v729 = vpop.f32.mrf.mxu0
    %v730 = vadd.f32 0.0, %v729
    %v731 = vpop.f32.mrf.mxu0
    %v732 = vadd.f32 0.0, %v731
    %733 = vmatmul.bf16.gmra.mxu0 %v578
    %v734 = vpop.f32.mrf.mxu0
    %v735 = vadd.f32 0.0, %v734
    %v736 = vpop.f32.mrf.mxu0
    %v737 = vadd.f32 0.0, %v736
    %738 = vmatmul.bf16.gmra.mxu0 %v581
    %v739 = vpop.f32.mrf.mxu0
    %v740 = vadd.f32 0.0, %v739
    %v741 = vpop.f32.mrf.mxu0
    %v742 = vadd.f32 0.0, %v741
    %743 = vmatmul.bf16.gmra.mxu0 %v584
    %v744 = vpop.f32.mrf.mxu0
    %v745 = vadd.f32 0.0, %v744
    %v746 = vpop.f32.mrf.mxu0
    %v747 = vadd.f32 0.0, %v746
    %748 = vmatmul.bf16.gmra.mxu0 %v587
    %v749 = vpop.f32.mrf.mxu0
    %v750 = vadd.f32 0.0, %v749
    %v751 = vpop.f32.mrf.mxu0
    %v752 = vadd.f32 0.0, %v751
    %753 = vmatmul.bf16.gmra.mxu0 %v590
    %v754 = vpop.f32.mrf.mxu0
    %v755 = vadd.f32 0.0, %v754
    %v756 = vpop.f32.mrf.mxu0
    %v757 = vadd.f32 0.0, %v756
    %758 = vmatmul.bf16.gmra.mxu0 %v593
    %v759 = vpop.f32.mrf.mxu0
    %v760 = vadd.f32 0.0, %v759
    %v761 = vpop.f32.mrf.mxu0
    %v762 = vadd.f32 0.0, %v761
    %763 = vdwg.mxu0
    %v764 = vpack.c.bf16 %v605, %v605
    %v765 = vpack.c.bf16 %v607, %v607
    %v766 = vpack.c.bf16 %v610, %v610
    %v767 = vpack.c.bf16 %v612, %v612
    %v768 = vpack.c.bf16 %v615, %v615
    %v769 = vpack.c.bf16 %v617, %v617
    %v770 = vpack.c.bf16 %v620, %v620
    %v771 = vpack.c.bf16 %v622, %v622
    %v772 = vpack.c.bf16 %v625, %v625
    %v773 = vpack.c.bf16 %v627, %v627
    %v774 = vpack.c.bf16 %v630, %v630
    %v775 = vpack.c.bf16 %v632, %v632
    %v776 = vpack.c.bf16 %v635, %v635
    %v777 = vpack.c.bf16 %v637, %v637
    %v778 = vpack.c.bf16 %v640, %v640
    %v779 = vpack.c.bf16 %v642, %v642
    %v780 = vpack.c.bf16 %v645, %v645
    %v781 = vpack.c.bf16 %v647, %v647
    %v782 = vpack.c.bf16 %v650, %v650
    %v783 = vpack.c.bf16 %v652, %v652
    %v784 = vpack.c.bf16 %v655, %v655
    %v785 = vpack.c.bf16 %v657, %v657
    %v786 = vpack.c.bf16 %v660, %v660
    %v787 = vpack.c.bf16 %v662, %v662
    %v788 = vpack.c.bf16 %v665, %v665
    %v789 = vpack.c.bf16 %v667, %v667
    %v790 = vpack.c.bf16 %v670, %v670
    %v791 = vpack.c.bf16 %v672, %v672
    %v792 = vpack.c.bf16 %v675, %v675
    %v793 = vpack.c.bf16 %v677, %v677
    %v794 = vpack.c.bf16 %v680, %v680
    %v795 = vpack.c.bf16 %v682, %v682
    %v796 = vpack.c.bf16 %v685, %v685
    %v797 = vpack.c.bf16 %v687, %v687
    %v798 = vpack.c.bf16 %v690, %v690
    %v799 = vpack.c.bf16 %v692, %v692
    %v800 = vpack.c.bf16 %v695, %v695
    %v801 = vpack.c.bf16 %v697, %v697
    %v802 = vpack.c.bf16 %v700, %v700
    %v803 = vpack.c.bf16 %v702, %v702
    %v804 = vpack.c.bf16 %v705, %v705
    %v805 = vpack.c.bf16 %v707, %v707
    %v806 = vpack.c.bf16 %v710, %v710
    %v807 = vpack.c.bf16 %v712, %v712
    %v808 = vpack.c.bf16 %v715, %v715
    %v809 = vpack.c.bf16 %v717, %v717
    %v810 = vpack.c.bf16 %v720, %v720
    %v811 = vpack.c.bf16 %v722, %v722
    %v812 = vpack.c.bf16 %v725, %v725
    %v813 = vpack.c.bf16 %v727, %v727
    %v814 = vpack.c.bf16 %v730, %v730
    %v815 = vpack.c.bf16 %v732, %v732
    %v816 = vpack.c.bf16 %v735, %v735
    %v817 = vpack.c.bf16 %v737, %v737
    %v818 = vpack.c.bf16 %v740, %v740
    %v819 = vpack.c.bf16 %v742, %v742
    %v820 = vpack.c.bf16 %v745, %v745
    %v821 = vpack.c.bf16 %v747, %v747
    %v822 = vpack.c.bf16 %v750, %v750
    %v823 = vpack.c.bf16 %v752, %v752
    %v824 = vpack.c.bf16 %v755, %v755
    %v825 = vpack.c.bf16 %v757, %v757
    %v826 = vpack.c.bf16 %v760, %v760
    %v827 = vpack.c.bf16 %v762, %v762
    %v844 = vunpack.c.l.b16 %v764
    %v845 = vunpack.c.l.b16 %v765
    %v846 = vunpack.c.l.b16 %v766
    %v847 = vunpack.c.l.b16 %v767
    %v848 = vunpack.c.l.b16 %v768
    %v849 = vunpack.c.l.b16 %v769
    %v850 = vunpack.c.l.b16 %v770
    %v851 = vunpack.c.l.b16 %v771
    %v852 = vunpack.c.l.b16 %v772
    %v853 = vunpack.c.l.b16 %v773
    %v854 = vunpack.c.l.b16 %v774
    %v855 = vunpack.c.l.b16 %v775
    %v856 = vunpack.c.l.b16 %v776
    %v857 = vunpack.c.l.b16 %v777
    %v858 = vunpack.c.l.b16 %v778
    %v859 = vunpack.c.l.b16 %v779
    %v860 = vpack.c.b16 %v845, %v844
    %v861 = vpack.c.b16 %v847, %v846
    %v862 = vpack.c.b16 %v849, %v848
    %v863 = vpack.c.b16 %v851, %v850
    %v864 = vpack.c.b16 %v853, %v852
    %v865 = vpack.c.b16 %v855, %v854
    %v866 = vpack.c.b16 %v857, %v856
    %v867 = vpack.c.b16 %v859, %v858
    %876 = vmatpush.bf16.msra.mxu0 %v867
    %877 = vmatpush.bf16.msra.mxu0 %v866
    %878 = vmatpush.bf16.msra.mxu0 %v865
    %879 = vmatpush.bf16.msra.mxu0 %v864
    %880 = vmatpush.bf16.msra.mxu0 %v863
    %881 = vmatpush.bf16.msra.mxu0 %v862
    %882 = vmatpush.bf16.msra.mxu0 %v861
    %883 = vmatpush.bf16.msra.mxu0 %v860
    %884 = vmatmul.bf16.gmra.mxu0 %v301
    %v885 = vpop.f32.mrf.mxu0
    %v886 = vadd.f32 0.0, %v885
    %v887 = vpop.f32.mrf.mxu0
    %888 = vdwg.mxu0
    %vm889 = vcmask 64512
    %v890 = vsel %vm889, %v886, -inf
    %891 = vmax.xlane.f32.xlu0 %v890
    %v892 = vpop.xlane.xlu0 %891
    %v893 = vsub.f32 %v886, %v892
    %v894 = vmul.f32 %v893, 1.442695
    %v895 = vpow.pop %v894
    %v896 = vsel %vm889, %v895, 0.0
    %897 = vadd.xlane.f32.xlu0 %v896
    %v898 = vpop.xlane.xlu0 %897
    %v899 = vrcp.pop %v898
    %v900 = vmul.f32 %v895, %v899
    %v901 = vpack.c.bf16 %v900, %v900
    %v903 = vsel %vm889, %v901, 0
    %vm905 = vcmask 1043456
    %v907 = vsel %vm905, %v303, 0
    %909 = vmatpush.bf16.msra.mxu0 0
    %910 = vmatpush.bf16.msra.mxu0 0
    %911 = vmatpush.bf16.msra.mxu0 0
    %912 = vmatpush.bf16.msra.mxu0 0
    %913 = vmatpush.bf16.msra.mxu0 0
    %914 = vmatpush.bf16.msra.mxu0 0
    %915 = vmatpush.bf16.msra.mxu0 0
    %916 = vmatpush.bf16.msra.mxu0 %v907
    %917 = vmatmul.bf16.gmra.mxu0 %v903
    %v918 = vpop.f32.mrf.mxu0
    %v919 = vadd.f32 0.0, %v918
    %v920 = vpop.f32.mrf.mxu0
    %921 = vdwg.mxu0
    %v923 = vunpack.c.h.b16 %v301
    %v924 = vpack.c.b16 %v923, %v923
    %v942 = vunpack.c.l.b16 %v780
    %v943 = vunpack.c.l.b16 %v781
    %v944 = vunpack.c.l.b16 %v782
    %v945 = vunpack.c.l.b16 %v783
    %v946 = vunpack.c.l.b16 %v784
    %v947 = vunpack.c.l.b16 %v785
    %v948 = vunpack.c.l.b16 %v786
    %v949 = vunpack.c.l.b16 %v787
    %v950 = vunpack.c.l.b16 %v788
    %v951 = vunpack.c.l.b16 %v789
    %v952 = vunpack.c.l.b16 %v790
    %v953 = vunpack.c.l.b16 %v791
    %v954 = vunpack.c.l.b16 %v792
    %v955 = vunpack.c.l.b16 %v793
    %v956 = vunpack.c.l.b16 %v794
    %v957 = vunpack.c.l.b16 %v795
    %v958 = vpack.c.b16 %v943, %v942
    %v959 = vpack.c.b16 %v945, %v944
    %v960 = vpack.c.b16 %v947, %v946
    %v961 = vpack.c.b16 %v949, %v948
    %v962 = vpack.c.b16 %v951, %v950
    %v963 = vpack.c.b16 %v953, %v952
    %v964 = vpack.c.b16 %v955, %v954
    %v965 = vpack.c.b16 %v957, %v956
    %974 = vmatpush.bf16.msra.mxu0 %v965
    %975 = vmatpush.bf16.msra.mxu0 %v964
    %976 = vmatpush.bf16.msra.mxu0 %v963
    %977 = vmatpush.bf16.msra.mxu0 %v962
    %978 = vmatpush.bf16.msra.mxu0 %v961
    %979 = vmatpush.bf16.msra.mxu0 %v960
    %980 = vmatpush.bf16.msra.mxu0 %v959
    %981 = vmatpush.bf16.msra.mxu0 %v958
    %982 = vmatmul.bf16.gmra.mxu0 %v924
    %v983 = vpop.f32.mrf.mxu0
    %v984 = vadd.f32 0.0, %v983
    %v985 = vpop.f32.mrf.mxu0
    %986 = vdwg.mxu0
    %v987 = vsel %vm889, %v984, -inf
    %988 = vmax.xlane.f32.xlu0 %v987
    %v989 = vpop.xlane.xlu0 %988
    %v990 = vsub.f32 %v984, %v989
    %v991 = vmul.f32 %v990, 1.442695
    %v992 = vpow.pop %v991
    %v993 = vsel %vm889, %v992, 0.0
    %994 = vadd.xlane.f32.xlu0 %v993
    %v995 = vpop.xlane.xlu0 %994
    %v996 = vrcp.pop %v995
    %v997 = vmul.f32 %v992, %v996
    %v998 = vpack.c.bf16 %v997, %v997
    %v1000 = vunpack.c.h.b16 %v303
    %v1001 = vpack.c.b16 %v1000, %v1000
    %v1003 = vsel %vm889, %v998, 0
    %v1006 = vsel %vm905, %v1001, 0
    %1008 = vmatpush.bf16.msra.mxu0 0
    %1009 = vmatpush.bf16.msra.mxu0 0
    %1010 = vmatpush.bf16.msra.mxu0 0
    %1011 = vmatpush.bf16.msra.mxu0 0
    %1012 = vmatpush.bf16.msra.mxu0 0
    %1013 = vmatpush.bf16.msra.mxu0 0
    %1014 = vmatpush.bf16.msra.mxu0 0
    %1015 = vmatpush.bf16.msra.mxu0 %v1006
    %1016 = vmatmul.bf16.gmra.mxu0 %v1003
    %v1017 = vpop.f32.mrf.mxu0
    %v1018 = vadd.f32 0.0, %v1017
    %v1019 = vpop.f32.mrf.mxu0
    %1020 = vdwg.mxu0
    %v1037 = vunpack.c.l.b16 %v796
    %v1038 = vunpack.c.l.b16 %v797
    %v1039 = vunpack.c.l.b16 %v798
    %v1040 = vunpack.c.l.b16 %v799
    %v1041 = vunpack.c.l.b16 %v800
    %v1042 = vunpack.c.l.b16 %v801
    %v1043 = vunpack.c.l.b16 %v802
    %v1044 = vunpack.c.l.b16 %v803
    %v1045 = vunpack.c.l.b16 %v804
    %v1046 = vunpack.c.l.b16 %v805
    %v1047 = vunpack.c.l.b16 %v806
    %v1048 = vunpack.c.l.b16 %v807
    %v1049 = vunpack.c.l.b16 %v808
    %v1050 = vunpack.c.l.b16 %v809
    %v1051 = vunpack.c.l.b16 %v810
    %v1052 = vunpack.c.l.b16 %v811
    %v1053 = vpack.c.b16 %v1038, %v1037
    %v1054 = vpack.c.b16 %v1040, %v1039
    %v1055 = vpack.c.b16 %v1042, %v1041
    %v1056 = vpack.c.b16 %v1044, %v1043
    %v1057 = vpack.c.b16 %v1046, %v1045
    %v1058 = vpack.c.b16 %v1048, %v1047
    %v1059 = vpack.c.b16 %v1050, %v1049
    %v1060 = vpack.c.b16 %v1052, %v1051
    %1069 = vmatpush.bf16.msra.mxu0 %v1060
    %1070 = vmatpush.bf16.msra.mxu0 %v1059
    %1071 = vmatpush.bf16.msra.mxu0 %v1058
    %1072 = vmatpush.bf16.msra.mxu0 %v1057
    %1073 = vmatpush.bf16.msra.mxu0 %v1056
    %1074 = vmatpush.bf16.msra.mxu0 %v1055
    %1075 = vmatpush.bf16.msra.mxu0 %v1054
    %1076 = vmatpush.bf16.msra.mxu0 %v1053
    %1077 = vmatmul.bf16.gmra.mxu0 %v302
    %v1078 = vpop.f32.mrf.mxu0
    %v1079 = vadd.f32 0.0, %v1078
    %v1080 = vpop.f32.mrf.mxu0
    %1081 = vdwg.mxu0
    %v1082 = vsel %vm889, %v1079, -inf
    %1083 = vmax.xlane.f32.xlu0 %v1082
    %v1084 = vpop.xlane.xlu0 %1083
    %v1085 = vsub.f32 %v1079, %v1084
    %v1086 = vmul.f32 %v1085, 1.442695
    %v1087 = vpow.pop %v1086
    %v1088 = vsel %vm889, %v1087, 0.0
    %1089 = vadd.xlane.f32.xlu0 %v1088
    %v1090 = vpop.xlane.xlu0 %1089
    %v1091 = vrcp.pop %v1090
    %v1092 = vmul.f32 %v1087, %v1091
    %v1093 = vpack.c.bf16 %v1092, %v1092
    %v1095 = vsel %vm889, %v1093, 0
    %v1098 = vsel %vm905, %v304, 0
    %1100 = vmatpush.bf16.msra.mxu0 0
    %1101 = vmatpush.bf16.msra.mxu0 0
    %1102 = vmatpush.bf16.msra.mxu0 0
    %1103 = vmatpush.bf16.msra.mxu0 0
    %1104 = vmatpush.bf16.msra.mxu0 0
    %1105 = vmatpush.bf16.msra.mxu0 0
    %1106 = vmatpush.bf16.msra.mxu0 0
    %1107 = vmatpush.bf16.msra.mxu0 %v1098
    %1108 = vmatmul.bf16.gmra.mxu0 %v1095
    %v1109 = vpop.f32.mrf.mxu0
    %v1110 = vadd.f32 0.0, %v1109
    %v1111 = vpop.f32.mrf.mxu0
    %1112 = vdwg.mxu0
    %v1114 = vunpack.c.h.b16 %v302
    %v1115 = vpack.c.b16 %v1114, %v1114
    %v1133 = vunpack.c.l.b16 %v812
    %v1134 = vunpack.c.l.b16 %v813
    %v1135 = vunpack.c.l.b16 %v814
    %v1136 = vunpack.c.l.b16 %v815
    %v1137 = vunpack.c.l.b16 %v816
    %v1138 = vunpack.c.l.b16 %v817
    %v1139 = vunpack.c.l.b16 %v818
    %v1140 = vunpack.c.l.b16 %v819
    %v1141 = vunpack.c.l.b16 %v820
    %v1142 = vunpack.c.l.b16 %v821
    %v1143 = vunpack.c.l.b16 %v822
    %v1144 = vunpack.c.l.b16 %v823
    %v1145 = vunpack.c.l.b16 %v824
    %v1146 = vunpack.c.l.b16 %v825
    %v1147 = vunpack.c.l.b16 %v826
    %v1148 = vunpack.c.l.b16 %v827
    %v1149 = vpack.c.b16 %v1134, %v1133
    %v1150 = vpack.c.b16 %v1136, %v1135
    %v1151 = vpack.c.b16 %v1138, %v1137
    %v1152 = vpack.c.b16 %v1140, %v1139
    %v1153 = vpack.c.b16 %v1142, %v1141
    %v1154 = vpack.c.b16 %v1144, %v1143
    %v1155 = vpack.c.b16 %v1146, %v1145
    %v1156 = vpack.c.b16 %v1148, %v1147
    %1165 = vmatpush.bf16.msra.mxu0 %v1156
    %1166 = vmatpush.bf16.msra.mxu0 %v1155
    %1167 = vmatpush.bf16.msra.mxu0 %v1154
    %1168 = vmatpush.bf16.msra.mxu0 %v1153
    %1169 = vmatpush.bf16.msra.mxu0 %v1152
    %1170 = vmatpush.bf16.msra.mxu0 %v1151
    %1171 = vmatpush.bf16.msra.mxu0 %v1150
    %1172 = vmatpush.bf16.msra.mxu0 %v1149
    %1173 = vmatmul.bf16.gmra.mxu0 %v1115
    %v1174 = vpop.f32.mrf.mxu0
    %v1175 = vadd.f32 0.0, %v1174
    %v1176 = vpop.f32.mrf.mxu0
    %1177 = vdwg.mxu0
    %v1178 = vsel %vm889, %v1175, -inf
    %1179 = vmax.xlane.f32.xlu0 %v1178
    %v1180 = vpop.xlane.xlu0 %1179
    %v1181 = vsub.f32 %v1175, %v1180
    %v1182 = vmul.f32 %v1181, 1.442695
    %v1183 = vpow.pop %v1182
    %v1184 = vsel %vm889, %v1183, 0.0
    %1185 = vadd.xlane.f32.xlu0 %v1184
    %v1186 = vpop.xlane.xlu0 %1185
    %v1187 = vrcp.pop %v1186
    %v1188 = vmul.f32 %v1183, %v1187
    %v1189 = vpack.c.bf16 %v1188, %v1188
    %v1191 = vunpack.c.h.b16 %v304
    %v1192 = vpack.c.b16 %v1191, %v1191
    %v1194 = vsel %vm889, %v1189, 0
    %v1197 = vsel %vm905, %v1192, 0
    %1199 = vmatpush.bf16.msra.mxu0 0
    %1200 = vmatpush.bf16.msra.mxu0 0
    %1201 = vmatpush.bf16.msra.mxu0 0
    %1202 = vmatpush.bf16.msra.mxu0 0
    %1203 = vmatpush.bf16.msra.mxu0 0
    %1204 = vmatpush.bf16.msra.mxu0 0
    %1205 = vmatpush.bf16.msra.mxu0 0
    %1206 = vmatpush.bf16.msra.mxu0 %v1197
    %1207 = vmatmul.bf16.gmra.mxu0 %v1194
    %v1208 = vpop.f32.mrf.mxu0
    %v1209 = vadd.f32 0.0, %v1208
    %v1210 = vpop.f32.mrf.mxu0
    %1211 = vdwg.mxu0
    %v1212 = vpack.c.bf16 %v151, %v137
    %v1213 = vpack.c.bf16 %v179, %v165
    %v1214 = vpack.c.bf16 %v207, %v193
    %v1215 = vpack.c.bf16 %v235, %v221
    %1216 = vxpose.xlu0.b32.start [1/16] %v23, 128
    %1217 = vxpose.xlu0.b32.cont [2/16] 0.0, 128
    %1218 = vxpose.xlu0.b32.cont [3/16] 0.0, 128
    %1219 = vxpose.xlu0.b32.cont [4/16] 0.0, 128
    %1220 = vxpose.xlu0.b32.cont [5/16] 0.0, 128
    %1221 = vxpose.xlu0.b32.cont [6/16] 0.0, 128
    %1222 = vxpose.xlu0.b32.cont [7/16] 0.0, 128
    %1223 = vxpose.xlu0.b32.cont [8/16] 0.0, 128
    %1224 = vxpose.xlu0.b32.cont [9/16] 0.0, 128
    %1225 = vxpose.xlu0.b32.cont [10/16] 0.0, 128
    %1226 = vxpose.xlu0.b32.cont [11/16] 0.0, 128
    %1227 = vxpose.xlu0.b32.cont [12/16] 0.0, 128
    %1228 = vxpose.xlu0.b32.cont [13/16] 0.0, 128
    %1229 = vxpose.xlu0.b32.cont [14/16] 0.0, 128
    %1230 = vxpose.xlu0.b32.cont [15/16] 0.0, 128
    %1231 = vxpose.xlu0.b32.end [16/16] 0.0, 128
    %v1232 = vpop.trf.xlu0
    %v1233 = vpop.trf.xlu0
    %v1234 = vpop.trf.xlu0
    %v1235 = vpop.trf.xlu0
    %v1236 = vpop.trf.xlu0
    %v1237 = vpop.trf.xlu0
    %v1238 = vpop.trf.xlu0
    %v1239 = vpop.trf.xlu0
    %v1240 = vpop.trf.xlu0
    %v1241 = vpop.trf.xlu0
    %v1242 = vpop.trf.xlu0
    %v1243 = vpop.trf.xlu0
    %v1244 = vpop.trf.xlu0
    %v1245 = vpop.trf.xlu0
    %v1246 = vpop.trf.xlu0
    %v1247 = vpop.trf.xlu0
    %v1248 = vpack.c.bf16 %v1233, %v1232
    %v1249 = vpack.c.bf16 %v1235, %v1234
    %1250 = vmatpush.bf16.msra.mxu0 0
    %1251 = vmatpush.bf16.msra.mxu0 0
    %1252 = vmatpush.bf16.msra.mxu0 0
    %1253 = vmatpush.bf16.msra.mxu0 0
    %1254 = vmatpush.bf16.msra.mxu0 0
    %1255 = vmatpush.bf16.msra.mxu0 0
    %1256 = vmatpush.bf16.msra.mxu0 %v1249
    %1257 = vmatpush.bf16.msra.mxu0 %v1248
    %1258 = vmatmul.bf16.gmra.mxu0 %v500
    %v1259 = vpop.f32.mrf.mxu0
    %v1260 = vadd.f32 0.0, %v1259
    %v1261 = vpop.f32.mrf.mxu0
    %v1262 = vadd.f32 0.0, %v1261
    %1263 = vmatmul.bf16.gmra.mxu0 %v503
    %v1264 = vpop.f32.mrf.mxu0
    %v1265 = vadd.f32 0.0, %v1264
    %v1266 = vpop.f32.mrf.mxu0
    %v1267 = vadd.f32 0.0, %v1266
    %1268 = vmatmul.bf16.gmra.mxu0 %v506
    %v1269 = vpop.f32.mrf.mxu0
    %v1270 = vadd.f32 0.0, %v1269
    %v1271 = vpop.f32.mrf.mxu0
    %v1272 = vadd.f32 0.0, %v1271
    %1273 = vmatmul.bf16.gmra.mxu0 %v509
    %v1274 = vpop.f32.mrf.mxu0
    %v1275 = vadd.f32 0.0, %v1274
    %v1276 = vpop.f32.mrf.mxu0
    %v1277 = vadd.f32 0.0, %v1276
    %1278 = vmatmul.bf16.gmra.mxu0 %v512
    %v1279 = vpop.f32.mrf.mxu0
    %v1280 = vadd.f32 0.0, %v1279
    %v1281 = vpop.f32.mrf.mxu0
    %v1282 = vadd.f32 0.0, %v1281
    %1283 = vmatmul.bf16.gmra.mxu0 %v515
    %v1284 = vpop.f32.mrf.mxu0
    %v1285 = vadd.f32 0.0, %v1284
    %v1286 = vpop.f32.mrf.mxu0
    %v1287 = vadd.f32 0.0, %v1286
    %1288 = vmatmul.bf16.gmra.mxu0 %v518
    %v1289 = vpop.f32.mrf.mxu0
    %v1290 = vadd.f32 0.0, %v1289
    %v1291 = vpop.f32.mrf.mxu0
    %v1292 = vadd.f32 0.0, %v1291
    %1293 = vmatmul.bf16.gmra.mxu0 %v521
    %v1294 = vpop.f32.mrf.mxu0
    %v1295 = vadd.f32 0.0, %v1294
    %v1296 = vpop.f32.mrf.mxu0
    %v1297 = vadd.f32 0.0, %v1296
    %1298 = vmatmul.bf16.gmra.mxu0 %v524
    %v1299 = vpop.f32.mrf.mxu0
    %v1300 = vadd.f32 0.0, %v1299
    %v1301 = vpop.f32.mrf.mxu0
    %v1302 = vadd.f32 0.0, %v1301
    %1303 = vmatmul.bf16.gmra.mxu0 %v527
    %v1304 = vpop.f32.mrf.mxu0
    %v1305 = vadd.f32 0.0, %v1304
    %v1306 = vpop.f32.mrf.mxu0
    %v1307 = vadd.f32 0.0, %v1306
    %1308 = vmatmul.bf16.gmra.mxu0 %v530
    %v1309 = vpop.f32.mrf.mxu0
    %v1310 = vadd.f32 0.0, %v1309
    %v1311 = vpop.f32.mrf.mxu0
    %v1312 = vadd.f32 0.0, %v1311
    %1313 = vmatmul.bf16.gmra.mxu0 %v533
    %v1314 = vpop.f32.mrf.mxu0
    %v1315 = vadd.f32 0.0, %v1314
    %v1316 = vpop.f32.mrf.mxu0
    %v1317 = vadd.f32 0.0, %v1316
    %1318 = vmatmul.bf16.gmra.mxu0 %v536
    %v1319 = vpop.f32.mrf.mxu0
    %v1320 = vadd.f32 0.0, %v1319
    %v1321 = vpop.f32.mrf.mxu0
    %v1322 = vadd.f32 0.0, %v1321
    %1323 = vmatmul.bf16.gmra.mxu0 %v539
    %v1324 = vpop.f32.mrf.mxu0
    %v1325 = vadd.f32 0.0, %v1324
    %v1326 = vpop.f32.mrf.mxu0
    %v1327 = vadd.f32 0.0, %v1326
    %1328 = vmatmul.bf16.gmra.mxu0 %v542
    %v1329 = vpop.f32.mrf.mxu0
    %v1330 = vadd.f32 0.0, %v1329
    %v1331 = vpop.f32.mrf.mxu0
    %v1332 = vadd.f32 0.0, %v1331
    %1333 = vmatmul.bf16.gmra.mxu0 %v545
    %v1334 = vpop.f32.mrf.mxu0
    %v1335 = vadd.f32 0.0, %v1334
    %v1336 = vpop.f32.mrf.mxu0
    %v1337 = vadd.f32 0.0, %v1336
    %1338 = vmatmul.bf16.gmra.mxu0 %v548
    %v1339 = vpop.f32.mrf.mxu0
    %v1340 = vadd.f32 0.0, %v1339
    %v1341 = vpop.f32.mrf.mxu0
    %v1342 = vadd.f32 0.0, %v1341
    %1343 = vmatmul.bf16.gmra.mxu0 %v551
    %v1344 = vpop.f32.mrf.mxu0
    %v1345 = vadd.f32 0.0, %v1344
    %v1346 = vpop.f32.mrf.mxu0
    %v1347 = vadd.f32 0.0, %v1346
    %1348 = vmatmul.bf16.gmra.mxu0 %v554
    %v1349 = vpop.f32.mrf.mxu0
    %v1350 = vadd.f32 0.0, %v1349
    %v1351 = vpop.f32.mrf.mxu0
    %v1352 = vadd.f32 0.0, %v1351
    %1353 = vmatmul.bf16.gmra.mxu0 %v557
    %v1354 = vpop.f32.mrf.mxu0
    %v1355 = vadd.f32 0.0, %v1354
    %v1356 = vpop.f32.mrf.mxu0
    %v1357 = vadd.f32 0.0, %v1356
    %1358 = vmatmul.bf16.gmra.mxu0 %v560
    %v1359 = vpop.f32.mrf.mxu0
    %v1360 = vadd.f32 0.0, %v1359
    %v1361 = vpop.f32.mrf.mxu0
    %v1362 = vadd.f32 0.0, %v1361
    %1363 = vmatmul.bf16.gmra.mxu0 %v563
    %v1364 = vpop.f32.mrf.mxu0
    %v1365 = vadd.f32 0.0, %v1364
    %v1366 = vpop.f32.mrf.mxu0
    %v1367 = vadd.f32 0.0, %v1366
    %1368 = vmatmul.bf16.gmra.mxu0 %v566
    %v1369 = vpop.f32.mrf.mxu0
    %v1370 = vadd.f32 0.0, %v1369
    %v1371 = vpop.f32.mrf.mxu0
    %v1372 = vadd.f32 0.0, %v1371
    %1373 = vmatmul.bf16.gmra.mxu0 %v569
    %v1374 = vpop.f32.mrf.mxu0
    %v1375 = vadd.f32 0.0, %v1374
    %v1376 = vpop.f32.mrf.mxu0
    %v1377 = vadd.f32 0.0, %v1376
    %1378 = vmatmul.bf16.gmra.mxu0 %v572
    %v1379 = vpop.f32.mrf.mxu0
    %v1380 = vadd.f32 0.0, %v1379
    %v1381 = vpop.f32.mrf.mxu0
    %v1382 = vadd.f32 0.0, %v1381
    %1383 = vmatmul.bf16.gmra.mxu0 %v575
    %v1384 = vpop.f32.mrf.mxu0
    %v1385 = vadd.f32 0.0, %v1384
    %v1386 = vpop.f32.mrf.mxu0
    %v1387 = vadd.f32 0.0, %v1386
    %1388 = vmatmul.bf16.gmra.mxu0 %v578
    %v1389 = vpop.f32.mrf.mxu0
    %v1390 = vadd.f32 0.0, %v1389
    %v1391 = vpop.f32.mrf.mxu0
    %v1392 = vadd.f32 0.0, %v1391
    %1393 = vmatmul.bf16.gmra.mxu0 %v581
    %v1394 = vpop.f32.mrf.mxu0
    %v1395 = vadd.f32 0.0, %v1394
    %v1396 = vpop.f32.mrf.mxu0
    %v1397 = vadd.f32 0.0, %v1396
    %1398 = vmatmul.bf16.gmra.mxu0 %v584
    %v1399 = vpop.f32.mrf.mxu0
    %v1400 = vadd.f32 0.0, %v1399
    %v1401 = vpop.f32.mrf.mxu0
    %v1402 = vadd.f32 0.0, %v1401
    %1403 = vmatmul.bf16.gmra.mxu0 %v587
    %v1404 = vpop.f32.mrf.mxu0
    %v1405 = vadd.f32 0.0, %v1404
    %v1406 = vpop.f32.mrf.mxu0
    %v1407 = vadd.f32 0.0, %v1406
    %1408 = vmatmul.bf16.gmra.mxu0 %v590
    %v1409 = vpop.f32.mrf.mxu0
    %v1410 = vadd.f32 0.0, %v1409
    %v1411 = vpop.f32.mrf.mxu0
    %v1412 = vadd.f32 0.0, %v1411
    %1413 = vmatmul.bf16.gmra.mxu0 %v593
    %v1414 = vpop.f32.mrf.mxu0
    %v1415 = vadd.f32 0.0, %v1414
    %v1416 = vpop.f32.mrf.mxu0
    %v1417 = vadd.f32 0.0, %v1416
    %1418 = vdwg.mxu0
    %v1419 = vpack.c.bf16 %v1260, %v1260
    %v1420 = vpack.c.bf16 %v1262, %v1262
    %v1421 = vpack.c.bf16 %v1265, %v1265
    %v1422 = vpack.c.bf16 %v1267, %v1267
    %v1423 = vpack.c.bf16 %v1270, %v1270
    %v1424 = vpack.c.bf16 %v1272, %v1272
    %v1425 = vpack.c.bf16 %v1275, %v1275
    %v1426 = vpack.c.bf16 %v1277, %v1277
    %v1427 = vpack.c.bf16 %v1280, %v1280
    %v1428 = vpack.c.bf16 %v1282, %v1282
    %v1429 = vpack.c.bf16 %v1285, %v1285
    %v1430 = vpack.c.bf16 %v1287, %v1287
    %v1431 = vpack.c.bf16 %v1290, %v1290
    %v1432 = vpack.c.bf16 %v1292, %v1292
    %v1433 = vpack.c.bf16 %v1295, %v1295
    %v1434 = vpack.c.bf16 %v1297, %v1297
    %v1435 = vpack.c.bf16 %v1300, %v1300
    %v1436 = vpack.c.bf16 %v1302, %v1302
    %v1437 = vpack.c.bf16 %v1305, %v1305
    %v1438 = vpack.c.bf16 %v1307, %v1307
    %v1439 = vpack.c.bf16 %v1310, %v1310
    %v1440 = vpack.c.bf16 %v1312, %v1312
    %v1441 = vpack.c.bf16 %v1315, %v1315
    %v1442 = vpack.c.bf16 %v1317, %v1317
    %v1443 = vpack.c.bf16 %v1320, %v1320
    %v1444 = vpack.c.bf16 %v1322, %v1322
    %v1445 = vpack.c.bf16 %v1325, %v1325
    %v1446 = vpack.c.bf16 %v1327, %v1327
    %v1447 = vpack.c.bf16 %v1330, %v1330
    %v1448 = vpack.c.bf16 %v1332, %v1332
    %v1449 = vpack.c.bf16 %v1335, %v1335
    %v1450 = vpack.c.bf16 %v1337, %v1337
    %v1451 = vpack.c.bf16 %v1340, %v1340
    %v1452 = vpack.c.bf16 %v1342, %v1342
    %v1453 = vpack.c.bf16 %v1345, %v1345
    %v1454 = vpack.c.bf16 %v1347, %v1347
    %v1455 = vpack.c.bf16 %v1350, %v1350
    %v1456 = vpack.c.bf16 %v1352, %v1352
    %v1457 = vpack.c.bf16 %v1355, %v1355
    %v1458 = vpack.c.bf16 %v1357, %v1357
    %v1459 = vpack.c.bf16 %v1360, %v1360
    %v1460 = vpack.c.bf16 %v1362, %v1362
    %v1461 = vpack.c.bf16 %v1365, %v1365
    %v1462 = vpack.c.bf16 %v1367, %v1367
    %v1463 = vpack.c.bf16 %v1370, %v1370
    %v1464 = vpack.c.bf16 %v1372, %v1372
    %v1465 = vpack.c.bf16 %v1375, %v1375
    %v1466 = vpack.c.bf16 %v1377, %v1377
    %v1467 = vpack.c.bf16 %v1380, %v1380
    %v1468 = vpack.c.bf16 %v1382, %v1382
    %v1469 = vpack.c.bf16 %v1385, %v1385
    %v1470 = vpack.c.bf16 %v1387, %v1387
    %v1471 = vpack.c.bf16 %v1390, %v1390
    %v1472 = vpack.c.bf16 %v1392, %v1392
    %v1473 = vpack.c.bf16 %v1395, %v1395
    %v1474 = vpack.c.bf16 %v1397, %v1397
    %v1475 = vpack.c.bf16 %v1400, %v1400
    %v1476 = vpack.c.bf16 %v1402, %v1402
    %v1477 = vpack.c.bf16 %v1405, %v1405
    %v1478 = vpack.c.bf16 %v1407, %v1407
    %v1479 = vpack.c.bf16 %v1410, %v1410
    %v1480 = vpack.c.bf16 %v1412, %v1412
    %v1481 = vpack.c.bf16 %v1415, %v1415
    %v1482 = vpack.c.bf16 %v1417, %v1417
    %v1499 = vunpack.c.l.b16 %v1419
    %v1500 = vunpack.c.l.b16 %v1420
    %v1501 = vunpack.c.l.b16 %v1421
    %v1502 = vunpack.c.l.b16 %v1422
    %v1503 = vunpack.c.l.b16 %v1423
    %v1504 = vunpack.c.l.b16 %v1424
    %v1505 = vunpack.c.l.b16 %v1425
    %v1506 = vunpack.c.l.b16 %v1426
    %v1507 = vunpack.c.l.b16 %v1427
    %v1508 = vunpack.c.l.b16 %v1428
    %v1509 = vunpack.c.l.b16 %v1429
    %v1510 = vunpack.c.l.b16 %v1430
    %v1511 = vunpack.c.l.b16 %v1431
    %v1512 = vunpack.c.l.b16 %v1432
    %v1513 = vunpack.c.l.b16 %v1433
    %v1514 = vunpack.c.l.b16 %v1434
    %v1515 = vpack.c.b16 %v1500, %v1499
    %v1516 = vpack.c.b16 %v1502, %v1501
    %v1517 = vpack.c.b16 %v1504, %v1503
    %v1518 = vpack.c.b16 %v1506, %v1505
    %v1519 = vpack.c.b16 %v1508, %v1507
    %v1520 = vpack.c.b16 %v1510, %v1509
    %v1521 = vpack.c.b16 %v1512, %v1511
    %v1522 = vpack.c.b16 %v1514, %v1513
    %1531 = vmatpush.bf16.msra.mxu0 %v1522
    %1532 = vmatpush.bf16.msra.mxu0 %v1521
    %1533 = vmatpush.bf16.msra.mxu0 %v1520
    %1534 = vmatpush.bf16.msra.mxu0 %v1519
    %1535 = vmatpush.bf16.msra.mxu0 %v1518
    %1536 = vmatpush.bf16.msra.mxu0 %v1517
    %1537 = vmatpush.bf16.msra.mxu0 %v1516
    %1538 = vmatpush.bf16.msra.mxu0 %v1515
    %1539 = vmatmul.bf16.gmra.mxu0 %v1212
    %v1540 = vpop.f32.mrf.mxu0
    %v1541 = vadd.f32 0.0, %v1540
    %v1542 = vpop.f32.mrf.mxu0
    %1543 = vdwg.mxu0
    %v1544 = vsel %vm889, %v1541, -inf
    %1545 = vmax.xlane.f32.xlu0 %v1544
    %v1546 = vpop.xlane.xlu0 %1545
    %v1547 = vsub.f32 %v1541, %v1546
    %v1548 = vmul.f32 %v1547, 1.442695
    %v1549 = vpow.pop %v1548
    %v1550 = vsel %vm889, %v1549, 0.0
    %1551 = vadd.xlane.f32.xlu0 %v1550
    %v1552 = vpop.xlane.xlu0 %1551
    %v1553 = vrcp.pop %v1552
    %v1554 = vmul.f32 %v1549, %v1553
    %v1555 = vpack.c.bf16 %v1554, %v1554
    %v1557 = vsel %vm889, %v1555, 0
    %v1560 = vsel %vm905, %v1214, 0
    %1562 = vmatpush.bf16.msra.mxu0 0
    %1563 = vmatpush.bf16.msra.mxu0 0
    %1564 = vmatpush.bf16.msra.mxu0 0
    %1565 = vmatpush.bf16.msra.mxu0 0
    %1566 = vmatpush.bf16.msra.mxu0 0
    %1567 = vmatpush.bf16.msra.mxu0 0
    %1568 = vmatpush.bf16.msra.mxu0 0
    %1569 = vmatpush.bf16.msra.mxu0 %v1560
    %1570 = vmatmul.bf16.gmra.mxu0 %v1557
    %v1571 = vpop.f32.mrf.mxu0
    %v1572 = vadd.f32 0.0, %v1571
    %v1573 = vpop.f32.mrf.mxu0
    %1574 = vdwg.mxu0
    %v1576 = vunpack.c.h.b16 %v1212
    %v1577 = vpack.c.b16 %v1576, %v1576
    %v1595 = vunpack.c.l.b16 %v1435
    %v1596 = vunpack.c.l.b16 %v1436
    %v1597 = vunpack.c.l.b16 %v1437
    %v1598 = vunpack.c.l.b16 %v1438
    %v1599 = vunpack.c.l.b16 %v1439
    %v1600 = vunpack.c.l.b16 %v1440
    %v1601 = vunpack.c.l.b16 %v1441
    %v1602 = vunpack.c.l.b16 %v1442
    %v1603 = vunpack.c.l.b16 %v1443
    %v1604 = vunpack.c.l.b16 %v1444
    %v1605 = vunpack.c.l.b16 %v1445
    %v1606 = vunpack.c.l.b16 %v1446
    %v1607 = vunpack.c.l.b16 %v1447
    %v1608 = vunpack.c.l.b16 %v1448
    %v1609 = vunpack.c.l.b16 %v1449
    %v1610 = vunpack.c.l.b16 %v1450
    %v1611 = vpack.c.b16 %v1596, %v1595
    %v1612 = vpack.c.b16 %v1598, %v1597
    %v1613 = vpack.c.b16 %v1600, %v1599
    %v1614 = vpack.c.b16 %v1602, %v1601
    %v1615 = vpack.c.b16 %v1604, %v1603
    %v1616 = vpack.c.b16 %v1606, %v1605
    %v1617 = vpack.c.b16 %v1608, %v1607
    %v1618 = vpack.c.b16 %v1610, %v1609
    %1627 = vmatpush.bf16.msra.mxu0 %v1618
    %1628 = vmatpush.bf16.msra.mxu0 %v1617
    %1629 = vmatpush.bf16.msra.mxu0 %v1616
    %1630 = vmatpush.bf16.msra.mxu0 %v1615
    %1631 = vmatpush.bf16.msra.mxu0 %v1614
    %1632 = vmatpush.bf16.msra.mxu0 %v1613
    %1633 = vmatpush.bf16.msra.mxu0 %v1612
    %1634 = vmatpush.bf16.msra.mxu0 %v1611
    %1635 = vmatmul.bf16.gmra.mxu0 %v1577
    %v1636 = vpop.f32.mrf.mxu0
    %v1637 = vadd.f32 0.0, %v1636
    %v1638 = vpop.f32.mrf.mxu0
    %1639 = vdwg.mxu0
    %v1640 = vsel %vm889, %v1637, -inf
    %1641 = vmax.xlane.f32.xlu0 %v1640
    %v1642 = vpop.xlane.xlu0 %1641
    %v1643 = vsub.f32 %v1637, %v1642
    %v1644 = vmul.f32 %v1643, 1.442695
    %v1645 = vpow.pop %v1644
    %v1646 = vsel %vm889, %v1645, 0.0
    %1647 = vadd.xlane.f32.xlu0 %v1646
    %v1648 = vpop.xlane.xlu0 %1647
    %v1649 = vrcp.pop %v1648
    %v1650 = vmul.f32 %v1645, %v1649
    %v1651 = vpack.c.bf16 %v1650, %v1650
    %v1653 = vunpack.c.h.b16 %v1214
    %v1654 = vpack.c.b16 %v1653, %v1653
    %v1656 = vsel %vm889, %v1651, 0
    %v1659 = vsel %vm905, %v1654, 0
    %1661 = vmatpush.bf16.msra.mxu0 0
    %1662 = vmatpush.bf16.msra.mxu0 0
    %1663 = vmatpush.bf16.msra.mxu0 0
    %1664 = vmatpush.bf16.msra.mxu0 0
    %1665 = vmatpush.bf16.msra.mxu0 0
    %1666 = vmatpush.bf16.msra.mxu0 0
    %1667 = vmatpush.bf16.msra.mxu0 0
    %1668 = vmatpush.bf16.msra.mxu0 %v1659
    %1669 = vmatmul.bf16.gmra.mxu0 %v1656
    %v1670 = vpop.f32.mrf.mxu0
    %v1671 = vadd.f32 0.0, %v1670
    %v1672 = vpop.f32.mrf.mxu0
    %1673 = vdwg.mxu0
    %v1690 = vunpack.c.l.b16 %v1451
    %v1691 = vunpack.c.l.b16 %v1452
    %v1692 = vunpack.c.l.b16 %v1453
    %v1693 = vunpack.c.l.b16 %v1454
    %v1694 = vunpack.c.l.b16 %v1455
    %v1695 = vunpack.c.l.b16 %v1456
    %v1696 = vunpack.c.l.b16 %v1457
    %v1697 = vunpack.c.l.b16 %v1458
    %v1698 = vunpack.c.l.b16 %v1459
    %v1699 = vunpack.c.l.b16 %v1460
    %v1700 = vunpack.c.l.b16 %v1461
    %v1701 = vunpack.c.l.b16 %v1462
    %v1702 = vunpack.c.l.b16 %v1463
    %v1703 = vunpack.c.l.b16 %v1464
    %v1704 = vunpack.c.l.b16 %v1465
    %v1705 = vunpack.c.l.b16 %v1466
    %v1706 = vpack.c.b16 %v1691, %v1690
    %v1707 = vpack.c.b16 %v1693, %v1692
    %v1708 = vpack.c.b16 %v1695, %v1694
    %v1709 = vpack.c.b16 %v1697, %v1696
    %v1710 = vpack.c.b16 %v1699, %v1698
    %v1711 = vpack.c.b16 %v1701, %v1700
    %v1712 = vpack.c.b16 %v1703, %v1702
    %v1713 = vpack.c.b16 %v1705, %v1704
    %1722 = vmatpush.bf16.msra.mxu0 %v1713
    %1723 = vmatpush.bf16.msra.mxu0 %v1712
    %1724 = vmatpush.bf16.msra.mxu0 %v1711
    %1725 = vmatpush.bf16.msra.mxu0 %v1710
    %1726 = vmatpush.bf16.msra.mxu0 %v1709
    %1727 = vmatpush.bf16.msra.mxu0 %v1708
    %1728 = vmatpush.bf16.msra.mxu0 %v1707
    %1729 = vmatpush.bf16.msra.mxu0 %v1706
    %1730 = vmatmul.bf16.gmra.mxu0 %v1213
    %v1731 = vpop.f32.mrf.mxu0
    %v1732 = vadd.f32 0.0, %v1731
    %v1733 = vpop.f32.mrf.mxu0
    %1734 = vdwg.mxu0
    %v1735 = vsel %vm889, %v1732, -inf
    %1736 = vmax.xlane.f32.xlu0 %v1735
    %v1737 = vpop.xlane.xlu0 %1736
    %v1738 = vsub.f32 %v1732, %v1737
    %v1739 = vmul.f32 %v1738, 1.442695
    %v1740 = vpow.pop %v1739
    %v1741 = vsel %vm889, %v1740, 0.0
    %1742 = vadd.xlane.f32.xlu0 %v1741
    %v1743 = vpop.xlane.xlu0 %1742
    %v1744 = vrcp.pop %v1743
    %v1745 = vmul.f32 %v1740, %v1744
    %v1746 = vpack.c.bf16 %v1745, %v1745
    %v1748 = vsel %vm889, %v1746, 0
    %v1751 = vsel %vm905, %v1215, 0
    %1753 = vmatpush.bf16.msra.mxu0 0
    %1754 = vmatpush.bf16.msra.mxu0 0
    %1755 = vmatpush.bf16.msra.mxu0 0
    %1756 = vmatpush.bf16.msra.mxu0 0
    %1757 = vmatpush.bf16.msra.mxu0 0
    %1758 = vmatpush.bf16.msra.mxu0 0
    %1759 = vmatpush.bf16.msra.mxu0 0
    %1760 = vmatpush.bf16.msra.mxu0 %v1751
    %1761 = vmatmul.bf16.gmra.mxu0 %v1748
    %v1762 = vpop.f32.mrf.mxu0
    %v1763 = vadd.f32 0.0, %v1762
    %v1764 = vpop.f32.mrf.mxu0
    %1765 = vdwg.mxu0
    %v1767 = vunpack.c.h.b16 %v1213
    %v1768 = vpack.c.b16 %v1767, %v1767
    %v1786 = vunpack.c.l.b16 %v1467
    %v1787 = vunpack.c.l.b16 %v1468
    %v1788 = vunpack.c.l.b16 %v1469
    %v1789 = vunpack.c.l.b16 %v1470
    %v1790 = vunpack.c.l.b16 %v1471
    %v1791 = vunpack.c.l.b16 %v1472
    %v1792 = vunpack.c.l.b16 %v1473
    %v1793 = vunpack.c.l.b16 %v1474
    %v1794 = vunpack.c.l.b16 %v1475
    %v1795 = vunpack.c.l.b16 %v1476
    %v1796 = vunpack.c.l.b16 %v1477
    %v1797 = vunpack.c.l.b16 %v1478
    %v1798 = vunpack.c.l.b16 %v1479
    %v1799 = vunpack.c.l.b16 %v1480
    %v1800 = vunpack.c.l.b16 %v1481
    %v1801 = vunpack.c.l.b16 %v1482
    %v1802 = vpack.c.b16 %v1787, %v1786
    %v1803 = vpack.c.b16 %v1789, %v1788
    %v1804 = vpack.c.b16 %v1791, %v1790
    %v1805 = vpack.c.b16 %v1793, %v1792
    %v1806 = vpack.c.b16 %v1795, %v1794
    %v1807 = vpack.c.b16 %v1797, %v1796
    %v1808 = vpack.c.b16 %v1799, %v1798
    %v1809 = vpack.c.b16 %v1801, %v1800
    %1818 = vmatpush.bf16.msra.mxu0 %v1809
    %1819 = vmatpush.bf16.msra.mxu0 %v1808
    %1820 = vmatpush.bf16.msra.mxu0 %v1807
    %1821 = vmatpush.bf16.msra.mxu0 %v1806
    %1822 = vmatpush.bf16.msra.mxu0 %v1805
    %1823 = vmatpush.bf16.msra.mxu0 %v1804
    %1824 = vmatpush.bf16.msra.mxu0 %v1803
    %1825 = vmatpush.bf16.msra.mxu0 %v1802
    %1826 = vmatmul.bf16.gmra.mxu0 %v1768
    %v1827 = vpop.f32.mrf.mxu0
    %v1828 = vadd.f32 0.0, %v1827
    %v1829 = vpop.f32.mrf.mxu0
    %1830 = vdwg.mxu0
    %v1831 = vsel %vm889, %v1828, -inf
    %1832 = vmax.xlane.f32.xlu0 %v1831
    %v1833 = vpop.xlane.xlu0 %1832
    %v1834 = vsub.f32 %v1828, %v1833
    %v1835 = vmul.f32 %v1834, 1.442695
    %v1836 = vpow.pop %v1835
    %v1837 = vsel %vm889, %v1836, 0.0
    %1838 = vadd.xlane.f32.xlu0 %v1837
    %v1839 = vpop.xlane.xlu0 %1838
    %v1840 = vrcp.pop %v1839
    %v1841 = vmul.f32 %v1836, %v1840
    %v1842 = vpack.c.bf16 %v1841, %v1841
    %v1844 = vunpack.c.h.b16 %v1215
    %v1845 = vpack.c.b16 %v1844, %v1844
    %v1847 = vsel %vm889, %v1842, 0
    %v1850 = vsel %vm905, %v1845, 0
    %1852 = vmatpush.bf16.msra.mxu0 0
    %1853 = vmatpush.bf16.msra.mxu0 0
    %1854 = vmatpush.bf16.msra.mxu0 0
    %1855 = vmatpush.bf16.msra.mxu0 0
    %1856 = vmatpush.bf16.msra.mxu0 0
    %1857 = vmatpush.bf16.msra.mxu0 0
    %1858 = vmatpush.bf16.msra.mxu0 0
    %1859 = vmatpush.bf16.msra.mxu0 %v1850
    %1860 = vmatmul.bf16.gmra.mxu0 %v1847
    %v1861 = vpop.f32.mrf.mxu0
    %v1862 = vadd.f32 0.0, %v1861
    %v1863 = vpop.f32.mrf.mxu0
    %1864 = vdwg.mxu0
    %v1865 = vpack.c.bf16 %v1572, %v919
    %v1866 = vpack.c.bf16 %v1671, %v1018
    %v1867 = vpack.c.bf16 %v1763, %v1110
    %v1868 = vpack.c.bf16 %v1862, %v1209
    %v1869 = vld [vmem:[%s3] sm:$0xf]
    %v1870 = vld [vmem:[%s3 + $0x4] sm:$0xf]
    %v1871 = vld [vmem:[%s3 + $0x8] sm:$0xf]
    %v1872 = vld [vmem:[%s3 + $0xc] sm:$0xf]
    %v1873 = vld [vmem:[%s3 + $0x10] sm:$0xf]
    %v1874 = vld [vmem:[%s3 + $0x14] sm:$0xf]
    %v1875 = vld [vmem:[%s3 + $0x18] sm:$0xf]
    %v1876 = vld [vmem:[%s3 + $0x1c] sm:$0xf]
    %v1877 = vld [vmem:[%s3 + $0x20] sm:$0xf]
    %v1878 = vld [vmem:[%s3 + $0x24] sm:$0xf]
    %v1879 = vld [vmem:[%s3 + $0x28] sm:$0xf]
    %v1880 = vld [vmem:[%s3 + $0x2c] sm:$0xf]
    %v1881 = vld [vmem:[%s3 + $0x30] sm:$0xf]
    %v1882 = vld [vmem:[%s3 + $0x34] sm:$0xf]
    %v1883 = vld [vmem:[%s3 + $0x38] sm:$0xf]
    %v1884 = vld [vmem:[%s3 + $0x3c] sm:$0xf]
    %v1885 = vld [vmem:[%s3 + $0x40] sm:$0xf]
    %v1886 = vld [vmem:[%s3 + $0x44] sm:$0xf]
    %v1887 = vld [vmem:[%s3 + $0x48] sm:$0xf]
    %v1888 = vld [vmem:[%s3 + $0x4c] sm:$0xf]
    %v1889 = vld [vmem:[%s3 + $0x50] sm:$0xf]
    %v1890 = vld [vmem:[%s3 + $0x54] sm:$0xf]
    %v1891 = vld [vmem:[%s3 + $0x58] sm:$0xf]
    %v1892 = vld [vmem:[%s3 + $0x5c] sm:$0xf]
    %v1893 = vld [vmem:[%s3 + $0x60] sm:$0xf]
    %v1894 = vld [vmem:[%s3 + $0x64] sm:$0xf]
    %v1895 = vld [vmem:[%s3 + $0x68] sm:$0xf]
    %v1896 = vld [vmem:[%s3 + $0x6c] sm:$0xf]
    %v1897 = vld [vmem:[%s3 + $0x70] sm:$0xf]
    %v1898 = vld [vmem:[%s3 + $0x74] sm:$0xf]
    %v1899 = vld [vmem:[%s3 + $0x78] sm:$0xf]
    %v1900 = vld [vmem:[%s3 + $0x7c] sm:$0xf]
    %v1901 = vld [vmem:[%s3 + $0x80] sm:$0xf]
    %v1902 = vld [vmem:[%s3 + $0x84] sm:$0xf]
    %v1903 = vld [vmem:[%s3 + $0x88] sm:$0xf]
    %v1904 = vld [vmem:[%s3 + $0x8c] sm:$0xf]
    %v1905 = vld [vmem:[%s3 + $0x90] sm:$0xf]
    %v1906 = vld [vmem:[%s3 + $0x94] sm:$0xf]
    %v1907 = vld [vmem:[%s3 + $0x98] sm:$0xf]
    %v1908 = vld [vmem:[%s3 + $0x9c] sm:$0xf]
    %v1909 = vld [vmem:[%s3 + $0xa0] sm:$0xf]
    %v1910 = vld [vmem:[%s3 + $0xa4] sm:$0xf]
    %v1911 = vld [vmem:[%s3 + $0xa8] sm:$0xf]
    %v1912 = vld [vmem:[%s3 + $0xac] sm:$0xf]
    %v1913 = vld [vmem:[%s3 + $0xb0] sm:$0xf]
    %v1914 = vld [vmem:[%s3 + $0xb4] sm:$0xf]
    %v1915 = vld [vmem:[%s3 + $0xb8] sm:$0xf]
    %v1916 = vld [vmem:[%s3 + $0xbc] sm:$0xf]
    %v1917 = vld [vmem:[%s3 + $0xc0] sm:$0xf]
    %v1918 = vld [vmem:[%s3 + $0xc4] sm:$0xf]
    %v1919 = vld [vmem:[%s3 + $0xc8] sm:$0xf]
    %v1920 = vld [vmem:[%s3 + $0xcc] sm:$0xf]
    %v1921 = vld [vmem:[%s3 + $0xd0] sm:$0xf]
    %v1922 = vld [vmem:[%s3 + $0xd4] sm:$0xf]
    %v1923 = vld [vmem:[%s3 + $0xd8] sm:$0xf]
    %v1924 = vld [vmem:[%s3 + $0xdc] sm:$0xf]
    %v1925 = vld [vmem:[%s3 + $0xe0] sm:$0xf]
    %v1926 = vld [vmem:[%s3 + $0xe4] sm:$0xf]
    %v1927 = vld [vmem:[%s3 + $0xe8] sm:$0xf]
    %v1928 = vld [vmem:[%s3 + $0xec] sm:$0xf]
    %v1929 = vld [vmem:[%s3 + $0xf0] sm:$0xf]
    %v1930 = vld [vmem:[%s3 + $0xf4] sm:$0xf]
    %v1931 = vld [vmem:[%s3 + $0xf8] sm:$0xf]
    %v1932 = vld [vmem:[%s3 + $0xfc] sm:$0xf]
    %v1933 = vld [vmem:[%s4] sm:$0x1]
    %v1935 = vperm.slane %v1933, 0
    %v2001 = vunpack.c.l.b16 %v1869
    %v2002 = vunpack.c.l.b16 %v1870
    %v2003 = vunpack.c.l.b16 %v1871
    %v2004 = vunpack.c.l.b16 %v1872
    %v2005 = vunpack.c.l.b16 %v1873
    %v2006 = vunpack.c.l.b16 %v1874
    %v2007 = vunpack.c.l.b16 %v1875
    %v2008 = vunpack.c.l.b16 %v1876
    %v2009 = vunpack.c.l.b16 %v1877
    %v2010 = vunpack.c.l.b16 %v1878
    %v2011 = vunpack.c.l.b16 %v1879
    %v2012 = vunpack.c.l.b16 %v1880
    %v2013 = vunpack.c.l.b16 %v1881
    %v2014 = vunpack.c.l.b16 %v1882
    %v2015 = vunpack.c.l.b16 %v1883
    %v2016 = vunpack.c.l.b16 %v1884
    %v2017 = vunpack.c.l.b16 %v1885
    %v2018 = vunpack.c.l.b16 %v1886
    %v2019 = vunpack.c.l.b16 %v1887
    %v2020 = vunpack.c.l.b16 %v1888
    %v2021 = vunpack.c.l.b16 %v1889
    %v2022 = vunpack.c.l.b16 %v1890
    %v2023 = vunpack.c.l.b16 %v1891
    %v2024 = vunpack.c.l.b16 %v1892
    %v2025 = vunpack.c.l.b16 %v1893
    %v2026 = vunpack.c.l.b16 %v1894
    %v2027 = vunpack.c.l.b16 %v1895
    %v2028 = vunpack.c.l.b16 %v1896
    %v2029 = vunpack.c.l.b16 %v1897
    %v2030 = vunpack.c.l.b16 %v1898
    %v2031 = vunpack.c.l.b16 %v1899
    %v2032 = vunpack.c.l.b16 %v1900
    %v2033 = vunpack.c.l.b16 %v1901
    %v2034 = vunpack.c.l.b16 %v1902
    %v2035 = vunpack.c.l.b16 %v1903
    %v2036 = vunpack.c.l.b16 %v1904
    %v2037 = vunpack.c.l.b16 %v1905
    %v2038 = vunpack.c.l.b16 %v1906
    %v2039 = vunpack.c.l.b16 %v1907
    %v2040 = vunpack.c.l.b16 %v1908
    %v2041 = vunpack.c.l.b16 %v1909
    %v2042 = vunpack.c.l.b16 %v1910
    %v2043 = vunpack.c.l.b16 %v1911
    %v2044 = vunpack.c.l.b16 %v1912
    %v2045 = vunpack.c.l.b16 %v1913
    %v2046 = vunpack.c.l.b16 %v1914
    %v2047 = vunpack.c.l.b16 %v1915
    %v2048 = vunpack.c.l.b16 %v1916
    %v2049 = vunpack.c.l.b16 %v1917
    %v2050 = vunpack.c.l.b16 %v1918
    %v2051 = vunpack.c.l.b16 %v1919
    %v2052 = vunpack.c.l.b16 %v1920
    %v2053 = vunpack.c.l.b16 %v1921
    %v2054 = vunpack.c.l.b16 %v1922
    %v2055 = vunpack.c.l.b16 %v1923
    %v2056 = vunpack.c.l.b16 %v1924
    %v2057 = vunpack.c.l.b16 %v1925
    %v2058 = vunpack.c.l.b16 %v1926
    %v2059 = vunpack.c.l.b16 %v1927
    %v2060 = vunpack.c.l.b16 %v1928
    %v2061 = vunpack.c.l.b16 %v1929
    %v2062 = vunpack.c.l.b16 %v1930
    %v2063 = vunpack.c.l.b16 %v1931
    %v2064 = vunpack.c.l.b16 %v1932
    %v2065 = vpack.c.b16 %v2002, %v2001
    %v2066 = vpack.c.b16 %v2004, %v2003
    %v2067 = vpack.c.b16 %v2006, %v2005
    %v2068 = vpack.c.b16 %v2008, %v2007
    %v2069 = vpack.c.b16 %v2010, %v2009
    %v2070 = vpack.c.b16 %v2012, %v2011
    %v2071 = vpack.c.b16 %v2014, %v2013
    %v2072 = vpack.c.b16 %v2016, %v2015
    %v2073 = vpack.c.b16 %v2018, %v2017
    %v2074 = vpack.c.b16 %v2020, %v2019
    %v2075 = vpack.c.b16 %v2022, %v2021
    %v2076 = vpack.c.b16 %v2024, %v2023
    %v2077 = vpack.c.b16 %v2026, %v2025
    %v2078 = vpack.c.b16 %v2028, %v2027
    %v2079 = vpack.c.b16 %v2030, %v2029
    %v2080 = vpack.c.b16 %v2032, %v2031
    %v2081 = vpack.c.b16 %v2034, %v2033
    %v2082 = vpack.c.b16 %v2036, %v2035
    %v2083 = vpack.c.b16 %v2038, %v2037
    %v2084 = vpack.c.b16 %v2040, %v2039
    %v2085 = vpack.c.b16 %v2042, %v2041
    %v2086 = vpack.c.b16 %v2044, %v2043
    %v2087 = vpack.c.b16 %v2046, %v2045
    %v2088 = vpack.c.b16 %v2048, %v2047
    %v2089 = vpack.c.b16 %v2050, %v2049
    %v2090 = vpack.c.b16 %v2052, %v2051
    %v2091 = vpack.c.b16 %v2054, %v2053
    %v2092 = vpack.c.b16 %v2056, %v2055
    %v2093 = vpack.c.b16 %v2058, %v2057
    %v2094 = vpack.c.b16 %v2060, %v2059
    %v2095 = vpack.c.b16 %v2062, %v2061
    %v2096 = vpack.c.b16 %v2064, %v2063
    %2129 = vmatpush.bf16.msra.mxu0 %v2072
    %2130 = vmatpush.bf16.msra.mxu0 %v2071
    %2131 = vmatpush.bf16.msra.mxu0 %v2070
    %2132 = vmatpush.bf16.msra.mxu0 %v2069
    %2133 = vmatpush.bf16.msra.mxu0 %v2068
    %2134 = vmatpush.bf16.msra.mxu0 %v2067
    %2135 = vmatpush.bf16.msra.mxu0 %v2066
    %2136 = vmatpush.bf16.msra.mxu0 %v2065
    %2137 = vmatmul.bf16.gmra.mxu0 %v1865
    %v2138 = vpop.f32.mrf.mxu0
    %v2139 = vadd.f32 %v1935, %v2138
    %v2140 = vpop.f32.mrf.mxu0
    %v2141 = vadd.f32 %v1935, %v2140
    %2142 = vdwg.mxu0
    %2143 = vmatpush.bf16.msra.mxu0 %v2080
    %2144 = vmatpush.bf16.msra.mxu0 %v2079
    %2145 = vmatpush.bf16.msra.mxu0 %v2078
    %2146 = vmatpush.bf16.msra.mxu0 %v2077
    %2147 = vmatpush.bf16.msra.mxu0 %v2076
    %2148 = vmatpush.bf16.msra.mxu0 %v2075
    %2149 = vmatpush.bf16.msra.mxu0 %v2074
    %2150 = vmatpush.bf16.msra.mxu0 %v2073
    %2151 = vmatmul.bf16.gmra.mxu0 %v1866
    %v2152 = vpop.f32.mrf.mxu0
    %v2153 = vadd.f32 %v2139, %v2152
    %v2154 = vpop.f32.mrf.mxu0
    %v2155 = vadd.f32 %v2141, %v2154
    %2156 = vdwg.mxu0
    %2157 = vmatpush.bf16.msra.mxu0 %v2088
    %2158 = vmatpush.bf16.msra.mxu0 %v2087
    %2159 = vmatpush.bf16.msra.mxu0 %v2086
    %2160 = vmatpush.bf16.msra.mxu0 %v2085
    %2161 = vmatpush.bf16.msra.mxu0 %v2084
    %2162 = vmatpush.bf16.msra.mxu0 %v2083
    %2163 = vmatpush.bf16.msra.mxu0 %v2082
    %2164 = vmatpush.bf16.msra.mxu0 %v2081
    %2165 = vmatmul.bf16.gmra.mxu0 %v1867
    %v2166 = vpop.f32.mrf.mxu0
    %v2167 = vadd.f32 %v2153, %v2166
    %v2168 = vpop.f32.mrf.mxu0
    %v2169 = vadd.f32 %v2155, %v2168
    %2170 = vdwg.mxu0
    %2171 = vmatpush.bf16.msra.mxu0 %v2096
    %2172 = vmatpush.bf16.msra.mxu0 %v2095
    %2173 = vmatpush.bf16.msra.mxu0 %v2094
    %2174 = vmatpush.bf16.msra.mxu0 %v2093
    %2175 = vmatpush.bf16.msra.mxu0 %v2092
    %2176 = vmatpush.bf16.msra.mxu0 %v2091
    %2177 = vmatpush.bf16.msra.mxu0 %v2090
    %2178 = vmatpush.bf16.msra.mxu0 %v2089
    %2179 = vmatmul.bf16.gmra.mxu0 %v1868
    %v2180 = vpop.f32.mrf.mxu0
    %v2181 = vadd.f32 %v2167, %v2180
    %v2182 = vpop.f32.mrf.mxu0
    %v2183 = vadd.f32 %v2169, %v2182
    %2184 = vdwg.mxu0
    %2185 = vst.msk [vmem:[#allocation2] sm:$0xff] %vm121, %v2181
    %2186 = vst.msk [vmem:[#allocation2 + $0x8] sm:$0xff] %vm121, %v2183
    // Predicated region
    $region22: #{tpu_custom_call.1} parent=1 // pred_check
      _
    $region23: #{tpu_custom_call.1} parent=1 // pred_check_branch
      %2188 = sbr.rel (0) target = $region25
    $region24: #{tpu_custom_call.1} parent=1 // pred_region
      %2190 = vsyncadd [#allocation3], 0
      %s2191 = sshll.u32 [#allocation2], 4
      %s2192 = int_to_ptr.vmem [resolvable:$true] %s2191
      %s2193 = sshll.u32 %s5, 4
      %s2194 = int_to_ptr.hbm [resolvable:$true] %s2193
      %2199 = dma.vmem_to_hbm [thread:$0]  %s2192, 256, %s2194, [#allocation3], 128, 128, 8
    $region25: #{tpu_custom_call.1} parent=1 // pred_fallthru
      _
    // Predicated region
    $region26: #{tpu_custom_call.1} parent=1 // pred_check
      _
    $region27: #{tpu_custom_call.1} parent=1 // pred_check_branch
      %2201 = sbr.rel (0) target = $region29
    $region28: #{tpu_custom_call.1} parent=1 // pred_region
      %2203 = dma.done [#allocation3], 256
    $region29: #{tpu_custom_call.1} parent=1 // pred_fallthru
      _
    %2204 = vsyncpa [#allocation3], 1

</llo_original>
